<compile_context>
chip_gen: v7x
topology: tpu7x:2x2x1
jax: 0.10.0
libtpu: 0.0.40
codegen_flags: <defaults>
</compile_context>

<pallas_src>
import functools
import math

import jax
import jax.numpy as jnp
from jax import lax
from jax.experimental import pallas as pl
from jax.experimental.pallas import tpu as pltpu

_MIB = 1024 * 1024


# --------------------------------------------------------------------------- #
# Kernel
# --------------------------------------------------------------------------- #
def _make_kernel(emb: int, heads: int, t: int, tq: int, nq: int, mask: bool,
                 cd):
    hs = emb // heads

    def split_heads(z):
        # (rows, E) value -> (H, rows, hs); leading-axis stack of lane slices
        # (cheap layout work, no matmuls / XLU transposes).
        return jnp.stack([z[:, h * hs:(h + 1) * hs] for h in range(heads)],
                         axis=0)

    def kernel(x_ref, wq_ref, bq_ref, wk_ref, bk_ref, wv_ref, bv_ref,
               wp_ref, bp_ref, o_ref, k_sc, v_sc, m_sc, l_sc, acc_sc):
        qi = pl.program_id(1)

        def project_kv(x_rows, row0):
            # Full-width (tq,E)x(E,E) matmuls -> head slices into scratch.
            k_rows = (jnp.dot(x_rows, wk_ref[...],
                              preferred_element_type=jnp.float32)
                      + bk_ref[...]).astype(cd)
            v_rows = (jnp.dot(x_rows, wv_ref[...],
                              preferred_element_type=jnp.float32)
                      + bv_ref[...]).astype(cd)
            k_sc[:, pl.ds(row0, tq), :] = split_heads(k_rows)
            v_sc[:, pl.ds(row0, tq), :] = split_heads(v_rows)

        if mask:
            # Causal: spread the K/V projection across qi steps.  At step qi
            # only rows [qi*tq, (qi+1)*tq) are projected, which is exactly the
            # causal prefix any step >= qi needs (qi axis is sequential).
            x_q = x_ref[0]                                       # (tq, E)
            project_kv(x_q, pl.multiple_of(qi * tq, tq))
        else:
            # Full attention needs the whole K/V: project once per batch
            # element, chunked over row tiles to bound live temporaries.
            @pl.when(qi == 0)
            def _():
                @pl.loop(0, nq)
                def _(r):
                    r0 = pl.multiple_of(r * tq, tq)
                    project_kv(x_ref[0, pl.ds(r0, tq), :], r0)

            q_start = pl.multiple_of(qi * tq, tq)
            x_q = x_ref[0, pl.ds(q_start, tq), :]                # (tq, E)

        # ---- Q projection (scale folded into wq/bq on the host) ------------
        q_full = (jnp.dot(x_q, wq_ref[...],
                          preferred_element_type=jnp.float32)
                  + bq_ref[...]).astype(cd)                      # (tq, E)
        q_all = split_heads(q_full)                              # (H, tq, hs)

        # ---- online softmax over key tiles ---------------------------------
        m_sc[...] = jnp.full(m_sc.shape, -1e30, dtype=m_sc.dtype)
        l_sc[...] = jnp.zeros(l_sc.shape, dtype=l_sc.dtype)
        acc_sc[...] = jnp.zeros(acc_sc.shape, dtype=acc_sc.dtype)

        num_kv = (qi + 1) if mask else nq   # causal path skips masked tiles

        @pl.loop(0, num_kv)
        def _(j):
            k0 = pl.multiple_of(j * tq, tq)
            k_blk = k_sc[:, pl.ds(k0, tq), :]                    # (H, tq, hs)
            v_blk = v_sc[:, pl.ds(k0, tq), :]
            s = jnp.einsum("hqd,hkd->hqk", q_all, k_blk,
                           preferred_element_type=jnp.float32)   # (H, tq, tq)
            if mask:
                row = qi * tq + lax.broadcasted_iota(jnp.int32, (tq, tq), 0)
                col = k0 + lax.broadcasted_iota(jnp.int32, (tq, tq), 1)
                # Large finite negative (scores stay f32) is robust and only
                # bites on the diagonal tile; off-diagonal tiles are all-kept.
                s = jnp.where((col > row)[None, :, :], -1e30, s)

            m_prev = m_sc[...]
            m_new = jnp.maximum(m_prev, jnp.max(s, axis=-1, keepdims=True))
            alpha = jnp.exp(m_prev - m_new)
            p = jnp.exp(s - m_new)
            l_sc[...] = alpha * l_sc[...] + jnp.sum(p, axis=-1, keepdims=True)
            acc_sc[...] = alpha * acc_sc[...] + jnp.einsum(
                "hqk,hkd->hqd", p.astype(cd), v_blk,
                preferred_element_type=jnp.float32)
            m_sc[...] = m_new

        # ---- normalize (EUP reciprocal), merge heads, single c_proj matmul --
        r = pl.reciprocal(l_sc[...], approx=True)                # (H, tq, 1)
        a_norm = (acc_sc[...] * r).astype(cd)                    # (H, tq, hs)
        a_merged = jnp.concatenate([a_norm[h] for h in range(heads)],
                                   axis=-1)                      # (tq, E)
        out = jnp.dot(a_merged, wp_ref[...],
                      preferred_element_type=jnp.float32) + bp_ref[...]
        o_ref[0] = out.astype(o_ref.dtype)

    return kernel


# --------------------------------------------------------------------------- #
# VMEM budgeting / tile selection (generation aware)
# --------------------------------------------------------------------------- #
def _pad(n, m):
    return -(-n // m) * m


def _padded_bytes(shape, itemsize):
    """Approx. VMEM footprint of an array with (sublane, lane) tile padding."""
    sublane = {4: 8, 2: 16, 1: 32}.get(itemsize, 8)
    dims = list(shape)
    dims[-1] = _pad(dims[-1], 128)
    if len(dims) >= 2:
        dims[-2] = _pad(dims[-2], sublane)
    n = 1
    for d in dims:
        n *= d
    return n * itemsize


def _estimate_vmem(t, e, heads, hs, tq, mask, cd_bytes, out_bytes):
    x_rows = tq if mask else t
    est = 2 * _padded_bytes((x_rows, e), cd_bytes)          # x block (2 buffers)
    est += 4 * _padded_bytes((e, e), cd_bytes)              # weights, Buffered(1)
    est += 4 * _padded_bytes((1, e), 4)                     # biases, Buffered(1)
    est += 2 * _padded_bytes((tq, e), out_bytes)            # out block (2 buffers)
    est += 2 * heads * _padded_bytes((t, hs), cd_bytes)     # K / V scratch
    est += heads * _padded_bytes((tq, hs), 4)               # acc scratch
    est += 2 * heads * _padded_bytes((tq, 1), 4)            # m / l scratch (lane pad)
    est += heads * _padded_bytes((tq, hs), cd_bytes)        # live Q value
    est += 3 * heads * _padded_bytes((tq, tq), 4)           # score / prob / pv temps
    est += 6 * _padded_bytes((tq, e), 4)                    # projection / c_proj temps
    return est


def _vmem_budget_bytes():
    try:
        capacity = int(pltpu.get_tpu_info().vmem_capacity_bytes)
    except Exception:
        capacity = 64 * _MIB          # conservative default (v7x-sized VMEM)
    # Leave headroom for Mosaic-internal scratch instead of clamping to the
    # physical size (~60 MiB on 64 MiB parts, ~120 MiB on 128 MiB parts).
    return capacity - max(4 * _MIB, capacity // 16)


def _choose_q_tile(t, e, heads, hs, mask, cd_bytes, out_bytes, budget, q_tile):
    if q_tile is not None:
        if t % q_tile != 0:
            raise ValueError(f"q_tile={q_tile} must divide T={t}")
        return q_tile
    cands = [c for c in (512, 256, 128, 64, 32, 16, 8) if c < t and t % c == 0]
    if t <= 512:
        cands.insert(0, t)            # whole sequence as one tile if it fits
    if not cands:
        cands = [t]
    for c in cands:
        if _estimate_vmem(t, e, heads, hs, c, mask, cd_bytes, out_bytes) <= budget:
            return c
    raise ValueError(
        "SelfAttentionGPT2 Pallas kernel: no query tile fits the VMEM budget "
        f"({budget} bytes) for T={t}, E={e}, heads={heads}; pass a smaller "
        "q_tile or reduce the model size.")


def _const_spec(block_shape):
    """BlockSpec for a grid-invariant (weight/bias) input, single-buffered."""
    index_map = lambda bi, qi: (0,) * len(block_shape)
    try:
        return pl.BlockSpec(block_shape, index_map,
                            pipeline_mode=pl.Buffered(1))
    except Exception:                 # fallback if pipeline_mode is unsupported
        return pl.BlockSpec(block_shape, index_map)


# --------------------------------------------------------------------------- #
# Public entry point
# --------------------------------------------------------------------------- #
@functools.partial(jax.jit,
                   static_argnames=("heads", "mask", "compute_dtype", "q_tile"))
def self_attention_gpt2(x, w_attn, b_attn, w_proj, b_proj, *, heads,
                        mask=False, compute_dtype=jnp.bfloat16, q_tile=None):
    """x: (B, T, E). w_attn: (E, 3E), b_attn: (3E,), w_proj: (E, E), b_proj: (E,).

    Linear weights use the pre-transposed (in_features, out_features) layout,
    so y = x @ W + b (equivalent to torch.nn.Linear's x @ W.T + b).  MXU
    operands use `compute_dtype`; accumulation / softmax stay in f32.
    """
    b, t, e = x.shape
    assert e % heads == 0, "emb must be divisible by heads"
    hs = e // heads
    out_dtype = x.dtype
    cd = jnp.dtype(compute_dtype)

    budget = _vmem_budget_bytes()
    cd_bytes = cd.itemsize
    out_bytes = jnp.dtype(out_dtype).itemsize
    tq = _choose_q_tile(t, e, heads, hs, mask, cd_bytes, out_bytes, budget,
                        q_tile)
    nq = t // tq
    est = _estimate_vmem(t, e, heads, hs, tq, mask, cd_bytes, out_bytes)
    vmem_limit = int(min(budget, max(est + est // 4, 32 * _MIB)))

    # --- host-side weight preprocessing ---------------------------------------
    scale = 1.0 / math.sqrt(hs)
    w_q, w_k, w_v = w_attn[:, :e], w_attn[:, e:2 * e], w_attn[:, 2 * e:]
    b_q, b_k, b_v = b_attn[:e], b_attn[e:2 * e], b_attn[2 * e:]
    wq = (w_q * scale).astype(cd)      # fold 1/sqrt(hs) into the Q projection
    wk = w_k.astype(cd)
    wv = w_v.astype(cd)
    wp = w_proj.astype(cd)
    bq = (b_q * scale).reshape(1, e).astype(jnp.float32)
    bk = b_k.reshape(1, e).astype(jnp.float32)
    bv = b_v.reshape(1, e).astype(jnp.float32)
    bp = b_proj.reshape(1, e).astype(jnp.float32)
    x_c = x.astype(cd)

    kernel = _make_kernel(e, heads, t, tq, nq, mask, cd)

    if mask:
        # Incremental K/V projection -> only the current query tile of x.
        x_spec = pl.BlockSpec((1, tq, e), lambda bi, qi: (bi, qi, 0))
    else:
        # Full-sequence K/V projection at qi==0 -> full-sequence x block
        # (same block across qi, so it is DMA'd once per batch element).
        x_spec = pl.BlockSpec((1, t, e), lambda bi, qi: (bi, 0, 0))

    grid_spec = pltpu.PrefetchScalarGridSpec(
        num_scalar_prefetch=0,
        grid=(b, nq),
        in_specs=[
            x_spec,
            _const_spec((e, e)), _const_spec((1, e)),   # w_q (scaled), b_q
            _const_spec((e, e)), _const_spec((1, e)),   # w_k, b_k
            _const_spec((e, e)), _const_spec((1, e)),   # w_v, b_v
            _const_spec((e, e)), _const_spec((1, e)),   # w_proj, b_proj
        ],
        out_specs=pl.BlockSpec((1, tq, e), lambda bi, qi: (bi, qi, 0)),
        scratch_shapes=[
            pltpu.VMEM((heads, t, hs), cd),            # K cache (persists over qi)
            pltpu.VMEM((heads, t, hs), cd),            # V cache (persists over qi)
            pltpu.VMEM((heads, tq, 1), jnp.float32),   # online-softmax running max
            pltpu.VMEM((heads, tq, 1), jnp.float32),   # online-softmax running sum
            pltpu.VMEM((heads, tq, hs), jnp.float32),  # unnormalized output acc
        ],
    )

    return pl.pallas_call(
        kernel,
        out_shape=jax.ShapeDtypeStruct((b, t, e), out_dtype),
        grid_spec=grid_spec,
        compiler_params=pltpu.CompilerParams(
            # Batch axis feeds megacore / both v7x TensorCores; the query-tile
            # axis must stay "arbitrary": the K/V scratch is filled across it.
            dimension_semantics=("parallel", "arbitrary"),
            vmem_limit_bytes=vmem_limit,
        ),
    )(x_c, wq, bq, wk, bk, wv, bv, wp, bp)


# --------------------------------------------------------------------------- #
# Pure-JAX reference + self-test
# --------------------------------------------------------------------------- #
def _reference(x, w_attn, b_attn, w_proj, b_proj, *, heads, mask=False):
    """Pure-JAX mirror of the PyTorch forward, for verification."""
    b, t, e = x.shape
    hs = e // heads
    qkv = x @ w_attn + b_attn                                  # (B, T, 3E)
    q, k, v = jnp.split(qkv, 3, axis=-1)

    def split_heads(z):                                        # (B,T,E)->(B,H,T,hs)
        return z.reshape(b, t, heads, hs).transpose(0, 2, 1, 3)

    q, k, v = split_heads(q), split_heads(k), split_heads(v)
    dot = jnp.einsum("bhtd,bhsd->bhts", q, k) / float(hs) ** 0.5
    if mask:
        row = jnp.arange(t)[:, None]
        col = jnp.arange(t)[None, :]
        dot = jnp.where(col > row, -jnp.inf, dot)
    p = jax.nn.softmax(dot, axis=-1)
    a = jnp.einsum("bhts,bhsd->bhtd", p, v)                    # (B, H, T, hs)
    a = a.transpose(0, 2, 1, 3).reshape(b, t, e)               # merge heads
    return a @ w_proj + b_proj


if __name__ == "__main__":
    B, T, E, HEADS = 2, 8, 32, 4

    key = jax.random.PRNGKey(0)
    kx, kwa, kba, kwp, kbp = jax.random.split(key, 5)

    x = jax.random.normal(kx, (B, T, E), dtype=jnp.float32)
    # nn.Linear(emb, 3*emb): weight (3E, E), bias (3E,). Pre-transposed to (E, 3E).
    w_attn = 0.02 * jax.random.normal(kwa, (E, 3 * E), dtype=jnp.float32)
    b_attn = 0.02 * jax.random.normal(kba, (3 * E,), dtype=jnp.float32)
    # nn.Linear(emb, emb): weight (E, E), bias (E,). Pre-transposed layout (E, E).
    w_proj = 0.02 * jax.random.normal(kwp, (E, E), dtype=jnp.float32)
    b_proj = 0.02 * jax.random.normal(kbp, (E,), dtype=jnp.float32)

    for use_mask in (False, True):     # module default mask=False; also causal
        ref = _reference(x, w_attn, b_attn, w_proj, b_proj,
                         heads=HEADS, mask=use_mask)
        for cd, atol in ((jnp.float32, 2e-3), (jnp.bfloat16, 2e-2)):
            out = self_attention_gpt2(x, w_attn, b_attn, w_proj, b_proj,
                                      heads=HEADS, mask=use_mask,
                                      compute_dtype=cd)
            out = jax.block_until_ready(out)
            assert out.shape == (B, T, E)
            err = float(jnp.max(jnp.abs(out.astype(jnp.float32) - ref)))
            assert err <= atol, (
                f"mismatch (mask={use_mask}, compute_dtype={cd}): "
                f"max abs err {err}")

    print("KERNEL_OK")
</pallas_src>

<mosaic_0001>
module attributes {stable_mosaic.version = 11 : i64} {
  func.func @kernel(%arg0: i32, %arg1: i32, %arg2: memref<1x8x32xf32, #tpu.memory_space<vmem>>, %arg3: memref<32x32xf32, #tpu.memory_space<vmem>>, %arg4: memref<1x32xf32, #tpu.memory_space<vmem>>, %arg5: memref<32x32xf32, #tpu.memory_space<vmem>>, %arg6: memref<1x32xf32, #tpu.memory_space<vmem>>, %arg7: memref<32x32xf32, #tpu.memory_space<vmem>>, %arg8: memref<1x32xf32, #tpu.memory_space<vmem>>, %arg9: memref<32x32xf32, #tpu.memory_space<vmem>>, %arg10: memref<1x32xf32, #tpu.memory_space<vmem>>, %arg11: memref<1x8x32xf32, #tpu.memory_space<vmem>>, %arg12: memref<4x8x8xf32, #tpu.memory_space<vmem>>, %arg13: memref<4x8x8xf32, #tpu.memory_space<vmem>>, %arg14: memref<4x8x1xf32, #tpu.memory_space<vmem>>, %arg15: memref<4x8x1xf32, #tpu.memory_space<vmem>>, %arg16: memref<4x8x8xf32, #tpu.memory_space<vmem>>) attributes {dimension_semantics = [#tpu.dimension_semantics<parallel>, #tpu.dimension_semantics<arbitrary>], iteration_bounds = array<i64: 2, 1>, scalar_prefetch = 0 : i64, scratch_operands = 5 : i64, tpu.core_type = #tpu.core_type<tc>, window_params = [{transform_indices = @transform_0, window_bounds = array<i64: 1, 8, 32>}, {pipeline_mode = #tpu.pipeline_mode<synchronous>, transform_indices = @transform_1, window_bounds = array<i64: 32, 32>}, {pipeline_mode = #tpu.pipeline_mode<synchronous>, transform_indices = @transform_2, window_bounds = array<i64: 1, 32>}, {pipeline_mode = #tpu.pipeline_mode<synchronous>, transform_indices = @transform_3, window_bounds = array<i64: 32, 32>}, {pipeline_mode = #tpu.pipeline_mode<synchronous>, transform_indices = @transform_4, window_bounds = array<i64: 1, 32>}, {pipeline_mode = #tpu.pipeline_mode<synchronous>, transform_indices = @transform_5, window_bounds = array<i64: 32, 32>}, {pipeline_mode = #tpu.pipeline_mode<synchronous>, transform_indices = @transform_6, window_bounds = array<i64: 1, 32>}, {pipeline_mode = #tpu.pipeline_mode<synchronous>, transform_indices = @transform_7, window_bounds = array<i64: 32, 32>}, {pipeline_mode = #tpu.pipeline_mode<synchronous>, transform_indices = @transform_8, window_bounds = array<i64: 1, 32>}, {transform_indices = @transform_9, window_bounds = array<i64: 1, 8, 32>}]} {
    %c0_i32 = arith.constant 0 : i32
    %0 = arith.cmpi eq, %arg1, %c0_i32 : i32
    %1 = arith.extui %0 : i1 to i32
    %c0_i32_0 = arith.constant 0 : i32
    %2 = arith.cmpi ne, %1, %c0_i32_0 : i32
    scf.if %2 {
      %c0_i32_62 = arith.constant 0 : i32
      %c1_i32_63 = arith.constant 1 : i32
      %81 = arith.muli %c0_i32_62, %c1_i32_63 : i32
      %c0_i32_64 = arith.constant 0 : i32
      %82 = arith.addi %c0_i32_64, %81 : i32
      %c8_i32_65 = arith.constant 8 : i32
      %83 = arith.muli %82, %c8_i32_65 : i32
      %84 = tpu.assume_multiple %83, 8 : i32
      %c0_66 = arith.constant 0 : index
      %85 = arith.index_cast %84 : i32 to index
      %c0_67 = arith.constant 0 : index
      %86 = vector.load %arg2[%c0_66, %85, %c0_67] : memref<1x8x32xf32, #tpu.memory_space<vmem>>, vector<1x8x32xf32>
      %87 = vector.shape_cast %86 : vector<1x8x32xf32> to vector<8x32xf32>
      %c0_68 = arith.constant 0 : index
      %c0_69 = arith.constant 0 : index
      %88 = vector.load %arg5[%c0_68, %c0_69] : memref<32x32xf32, #tpu.memory_space<vmem>>, vector<32x32xf32>
      %cst_70 = arith.constant dense<0.000000e+00> : vector<8x32xf32>
      %89 = tpu.matmul %87, %88, %cst_70 {dimension_numbers = #tpu.dot_dimension_numbers<[1], [0], [0], [1], [0, 0, 1, 1], [], []>} : vector<8x32xf32>, vector<32x32xf32>, vector<8x32xf32> -> vector<8x32xf32>
      %c0_71 = arith.constant 0 : index
      %c0_72 = arith.constant 0 : index
      %90 = vector.load %arg6[%c0_71, %c0_72] : memref<1x32xf32, #tpu.memory_space<vmem>>, vector<1x32xf32>
      %91 = vector.broadcast %90 : vector<1x32xf32> to vector<8x32xf32>
      %92 = arith.addf %89, %91 : vector<8x32xf32>
      %c0_73 = arith.constant 0 : index
      %c0_74 = arith.constant 0 : index
      %93 = vector.load %arg7[%c0_73, %c0_74] : memref<32x32xf32, #tpu.memory_space<vmem>>, vector<32x32xf32>
      %cst_75 = arith.constant dense<0.000000e+00> : vector<8x32xf32>
      %94 = tpu.matmul %87, %93, %cst_75 {dimension_numbers = #tpu.dot_dimension_numbers<[1], [0], [0], [1], [0, 0, 1, 1], [], []>} : vector<8x32xf32>, vector<32x32xf32>, vector<8x32xf32> -> vector<8x32xf32>
      %c0_76 = arith.constant 0 : index
      %c0_77 = arith.constant 0 : index
      %95 = vector.load %arg8[%c0_76, %c0_77] : memref<1x32xf32, #tpu.memory_space<vmem>>, vector<1x32xf32>
      %96 = vector.broadcast %95 : vector<1x32xf32> to vector<8x32xf32>
      %97 = arith.addf %94, %96 : vector<8x32xf32>
      %98 = vector.extract_strided_slice %92 {offsets = [0, 0], sizes = [8, 8], strides = [1, 1]} : vector<8x32xf32> to vector<8x8xf32>
      %99 = vector.extract_strided_slice %92 {offsets = [0, 8], sizes = [8, 8], strides = [1, 1]} : vector<8x32xf32> to vector<8x8xf32>
      %100 = vector.extract_strided_slice %92 {offsets = [0, 16], sizes = [8, 8], strides = [1, 1]} : vector<8x32xf32> to vector<8x8xf32>
      %101 = vector.extract_strided_slice %92 {offsets = [0, 24], sizes = [8, 8], strides = [1, 1]} : vector<8x32xf32> to vector<8x8xf32>
      %102 = vector.shape_cast %98 : vector<8x8xf32> to vector<1x8x8xf32>
      %103 = vector.shape_cast %99 : vector<8x8xf32> to vector<1x8x8xf32>
      %104 = vector.shape_cast %100 : vector<8x8xf32> to vector<1x8x8xf32>
      %105 = vector.shape_cast %101 : vector<8x8xf32> to vector<1x8x8xf32>
      %106 = tpu.concatenate %102, %103, %104, %105 in 0 : vector<1x8x8xf32>, vector<1x8x8xf32>, vector<1x8x8xf32>, vector<1x8x8xf32> -> vector<4x8x8xf32>
      %c0_78 = arith.constant 0 : index
      %107 = arith.index_cast %84 : i32 to index
      %c0_79 = arith.constant 0 : index
      %108 = vector.load %arg12[%c0_78, %107, %c0_79] : memref<4x8x8xf32, #tpu.memory_space<vmem>>, vector<4x8x8xf32>
      tpu.vector_store %arg12[%c0_78, %107, %c0_79], %106 {strides = array<i32>} : memref<4x8x8xf32, #tpu.memory_space<vmem>>, vector<4x8x8xf32>,
      %109 = vector.extract_strided_slice %97 {offsets = [0, 0], sizes = [8, 8], strides = [1, 1]} : vector<8x32xf32> to vector<8x8xf32>
      %110 = vector.extract_strided_slice %97 {offsets = [0, 8], sizes = [8, 8], strides = [1, 1]} : vector<8x32xf32> to vector<8x8xf32>
      %111 = vector.extract_strided_slice %97 {offsets = [0, 16], sizes = [8, 8], strides = [1, 1]} : vector<8x32xf32> to vector<8x8xf32>
      %112 = vector.extract_strided_slice %97 {offsets = [0, 24], sizes = [8, 8], strides = [1, 1]} : vector<8x32xf32> to vector<8x8xf32>
      %113 = vector.shape_cast %109 : vector<8x8xf32> to vector<1x8x8xf32>
      %114 = vector.shape_cast %110 : vector<8x8xf32> to vector<1x8x8xf32>
      %115 = vector.shape_cast %111 : vector<8x8xf32> to vector<1x8x8xf32>
      %116 = vector.shape_cast %112 : vector<8x8xf32> to vector<1x8x8xf32>
      %117 = tpu.concatenate %113, %114, %115, %116 in 0 : vector<1x8x8xf32>, vector<1x8x8xf32>, vector<1x8x8xf32>, vector<1x8x8xf32> -> vector<4x8x8xf32>
      %c0_80 = arith.constant 0 : index
      %118 = arith.index_cast %84 : i32 to index
      %c0_81 = arith.constant 0 : index
      %119 = vector.load %arg13[%c0_80, %118, %c0_81] : memref<4x8x8xf32, #tpu.memory_space<vmem>>, vector<4x8x8xf32>
      tpu.vector_store %arg13[%c0_80, %118, %c0_81], %117 {strides = array<i32>} : memref<4x8x8xf32, #tpu.memory_space<vmem>>, vector<4x8x8xf32>,
      %c1_i32_82 = arith.constant 1 : i32
    } else {
    }
    %c8_i32 = arith.constant 8 : i32
    %3 = arith.muli %arg1, %c8_i32 : i32
    %4 = tpu.assume_multiple %3, 8 : i32
    %c0 = arith.constant 0 : index
    %5 = arith.index_cast %4 : i32 to index
    %c0_1 = arith.constant 0 : index
    %6 = vector.load %arg2[%c0, %5, %c0_1] : memref<1x8x32xf32, #tpu.memory_space<vmem>>, vector<1x8x32xf32>
    %7 = vector.shape_cast %6 : vector<1x8x32xf32> to vector<8x32xf32>
    %c0_2 = arith.constant 0 : index
    %c0_3 = arith.constant 0 : index
    %8 = vector.load %arg3[%c0_2, %c0_3] : memref<32x32xf32, #tpu.memory_space<vmem>>, vector<32x32xf32>
    %cst = arith.constant dense<0.000000e+00> : vector<8x32xf32>
    %9 = tpu.matmul %7, %8, %cst {dimension_numbers = #tpu.dot_dimension_numbers<[1], [0], [0], [1], [0, 0, 1, 1], [], []>} : vector<8x32xf32>, vector<32x32xf32>, vector<8x32xf32> -> vector<8x32xf32>
    %c0_4 = arith.constant 0 : index
    %c0_5 = arith.constant 0 : index
    %10 = vector.load %arg4[%c0_4, %c0_5] : memref<1x32xf32, #tpu.memory_space<vmem>>, vector<1x32xf32>
    %11 = vector.broadcast %10 : vector<1x32xf32> to vector<8x32xf32>
    %12 = arith.addf %9, %11 : vector<8x32xf32>
    %13 = vector.extract_strided_slice %12 {offsets = [0, 0], sizes = [8, 8], strides = [1, 1]} : vector<8x32xf32> to vector<8x8xf32>
    %14 = vector.extract_strided_slice %12 {offsets = [0, 8], sizes = [8, 8], strides = [1, 1]} : vector<8x32xf32> to vector<8x8xf32>
    %15 = vector.extract_strided_slice %12 {offsets = [0, 16], sizes = [8, 8], strides = [1, 1]} : vector<8x32xf32> to vector<8x8xf32>
    %16 = vector.extract_strided_slice %12 {offsets = [0, 24], sizes = [8, 8], strides = [1, 1]} : vector<8x32xf32> to vector<8x8xf32>
    %17 = vector.shape_cast %13 : vector<8x8xf32> to vector<1x8x8xf32>
    %18 = vector.shape_cast %14 : vector<8x8xf32> to vector<1x8x8xf32>
    %19 = vector.shape_cast %15 : vector<8x8xf32> to vector<1x8x8xf32>
    %20 = vector.shape_cast %16 : vector<8x8xf32> to vector<1x8x8xf32>
    %21 = tpu.concatenate %17, %18, %19, %20 in 0 : vector<1x8x8xf32>, vector<1x8x8xf32>, vector<1x8x8xf32>, vector<1x8x8xf32> -> vector<4x8x8xf32>
    %cst_6 = arith.constant -1.000000e+30 : f32
    %22 = vector.broadcast %cst_6 : f32 to vector<4x8x1xf32>
    %c0_7 = arith.constant 0 : index
    %c0_8 = arith.constant 0 : index
    %c0_9 = arith.constant 0 : index
    %23 = vector.load %arg14[%c0_7, %c0_8, %c0_9] : memref<4x8x1xf32, #tpu.memory_space<vmem>>, vector<4x8x1xf32>
    tpu.vector_store %arg14[%c0_7, %c0_8, %c0_9], %22 {strides = array<i32>} : memref<4x8x1xf32, #tpu.memory_space<vmem>>, vector<4x8x1xf32>,
    %cst_10 = arith.constant 0.000000e+00 : f32
    %24 = vector.broadcast %cst_10 : f32 to vector<4x8x1xf32>
    %c0_11 = arith.constant 0 : index
    %c0_12 = arith.constant 0 : index
    %c0_13 = arith.constant 0 : index
    %25 = vector.load %arg15[%c0_11, %c0_12, %c0_13] : memref<4x8x1xf32, #tpu.memory_space<vmem>>, vector<4x8x1xf32>
    tpu.vector_store %arg15[%c0_11, %c0_12, %c0_13], %24 {strides = array<i32>} : memref<4x8x1xf32, #tpu.memory_space<vmem>>, vector<4x8x1xf32>,
    %cst_14 = arith.constant 0.000000e+00 : f32
    %26 = vector.broadcast %cst_14 : f32 to vector<4x8x8xf32>
    %c0_15 = arith.constant 0 : index
    %c0_16 = arith.constant 0 : index
    %c0_17 = arith.constant 0 : index
    %27 = vector.load %arg16[%c0_15, %c0_16, %c0_17] : memref<4x8x8xf32, #tpu.memory_space<vmem>>, vector<4x8x8xf32>
    tpu.vector_store %arg16[%c0_15, %c0_16, %c0_17], %26 {strides = array<i32>} : memref<4x8x8xf32, #tpu.memory_space<vmem>>, vector<4x8x8xf32>,
    %c0_i32_18 = arith.constant 0 : i32
    %c1_i32 = arith.constant 1 : i32
    %28 = arith.muli %c0_i32_18, %c1_i32 : i32
    %c0_i32_19 = arith.constant 0 : i32
    %29 = arith.addi %c0_i32_19, %28 : i32
    %c8_i32_20 = arith.constant 8 : i32
    %30 = arith.muli %29, %c8_i32_20 : i32
    %31 = tpu.assume_multiple %30, 8 : i32
    %c0_21 = arith.constant 0 : index
    %32 = arith.index_cast %31 : i32 to index
    %c0_22 = arith.constant 0 : index
    %33 = vector.load %arg12[%c0_21, %32, %c0_22] : memref<4x8x8xf32, #tpu.memory_space<vmem>>, vector<4x8x8xf32>
    %c0_23 = arith.constant 0 : index
    %34 = arith.index_cast %31 : i32 to index
    %c0_24 = arith.constant 0 : index
    %35 = vector.load %arg13[%c0_23, %34, %c0_24] : memref<4x8x8xf32, #tpu.memory_space<vmem>>, vector<4x8x8xf32>
    "tpu.trace_start"() <{level = 10 : i32, message = "hqd,hkd->hqk"}> : () -> ()
    %cst_25 = arith.constant dense<0.000000e+00> : vector<4x8x8xf32>
    %36 = tpu.matmul %21, %33, %cst_25 {dimension_numbers = #tpu.dot_dimension_numbers<[2], [2], [1], [1], [0, 0, 0, 1, 1, 1], [0], [0]>} : vector<4x8x8xf32>, vector<4x8x8xf32>, vector<4x8x8xf32> -> vector<4x8x8xf32>
    "tpu.trace_stop"() : () -> ()
    %c0_26 = arith.constant 0 : index
    %c0_27 = arith.constant 0 : index
    %c0_28 = arith.constant 0 : index
    %37 = vector.load %arg14[%c0_26, %c0_27, %c0_28] : memref<4x8x1xf32, #tpu.memory_space<vmem>>, vector<4x8x1xf32>
    %cst_29 = arith.constant dense<0xFF800000> : vector<4x8xf32>
    %38 = vector.multi_reduction <maximumf>, %36, %cst_29 [2] : vector<4x8x8xf32> to vector<4x8xf32>
    %39 = vector.shape_cast %38 : vector<4x8xf32> to vector<4x8x1xf32>
    %40 = arith.maximumf %37, %39 : vector<4x8x1xf32>
    %41 = arith.subf %37, %40 : vector<4x8x1xf32>
    %42 = math.exp %41 : vector<4x8x1xf32>
    %43 = vector.broadcast %40 : vector<4x8x1xf32> to vector<4x8x8xf32>
    %44 = arith.subf %36, %43 : vector<4x8x8xf32>
    %45 = math.exp %44 : vector<4x8x8xf32>
    %c0_30 = arith.constant 0 : index
    %c0_31 = arith.constant 0 : index
    %c0_32 = arith.constant 0 : index
    %46 = vector.load %arg15[%c0_30, %c0_31, %c0_32] : memref<4x8x1xf32, #tpu.memory_space<vmem>>, vector<4x8x1xf32>
    %47 = arith.mulf %42, %46 : vector<4x8x1xf32>
    %cst_33 = arith.constant dense<0.000000e+00> : vector<4x8xf32>
    %48 = vector.multi_reduction <add>, %45, %cst_33 [2] : vector<4x8x8xf32> to vector<4x8xf32>
    %49 = vector.shape_cast %48 : vector<4x8xf32> to vector<4x8x1xf32>
    %50 = arith.addf %47, %49 : vector<4x8x1xf32>
    %c0_34 = arith.constant 0 : index
    %c0_35 = arith.constant 0 : index
    %c0_36 = arith.constant 0 : index
    %51 = vector.load %arg15[%c0_34, %c0_35, %c0_36] : memref<4x8x1xf32, #tpu.memory_space<vmem>>, vector<4x8x1xf32>
    tpu.vector_store %arg15[%c0_34, %c0_35, %c0_36], %50 {strides = array<i32>} : memref<4x8x1xf32, #tpu.memory_space<vmem>>, vector<4x8x1xf32>,
    %c0_37 = arith.constant 0 : index
    %c0_38 = arith.constant 0 : index
    %c0_39 = arith.constant 0 : index
    %52 = vector.load %arg16[%c0_37, %c0_38, %c0_39] : memref<4x8x8xf32, #tpu.memory_space<vmem>>, vector<4x8x8xf32>
    %53 = vector.broadcast %42 : vector<4x8x1xf32> to vector<4x8x8xf32>
    %54 = arith.mulf %53, %52 : vector<4x8x8xf32>
    "tpu.trace_start"() <{level = 10 : i32, message = "hqk,hkd->hqd"}> : () -> ()
    %cst_40 = arith.constant dense<0.000000e+00> : vector<4x8x8xf32>
    %55 = tpu.matmul %45, %35, %cst_40 {dimension_numbers = #tpu.dot_dimension_numbers<[2], [1], [1], [2], [0, 0, 0, 1, 1, 2], [0], [0]>} : vector<4x8x8xf32>, vector<4x8x8xf32>, vector<4x8x8xf32> -> vector<4x8x8xf32>
    "tpu.trace_stop"() : () -> ()
    %56 = arith.addf %54, %55 : vector<4x8x8xf32>
    %c0_41 = arith.constant 0 : index
    %c0_42 = arith.constant 0 : index
    %c0_43 = arith.constant 0 : index
    %57 = vector.load %arg16[%c0_41, %c0_42, %c0_43] : memref<4x8x8xf32, #tpu.memory_space<vmem>>, vector<4x8x8xf32>
    tpu.vector_store %arg16[%c0_41, %c0_42, %c0_43], %56 {strides = array<i32>} : memref<4x8x8xf32, #tpu.memory_space<vmem>>, vector<4x8x8xf32>,
    %c0_44 = arith.constant 0 : index
    %c0_45 = arith.constant 0 : index
    %c0_46 = arith.constant 0 : index
    %58 = vector.load %arg14[%c0_44, %c0_45, %c0_46] : memref<4x8x1xf32, #tpu.memory_space<vmem>>, vector<4x8x1xf32>
    tpu.vector_store %arg14[%c0_44, %c0_45, %c0_46], %40 {strides = array<i32>} : memref<4x8x1xf32, #tpu.memory_space<vmem>>, vector<4x8x1xf32>,
    %c1_i32_47 = arith.constant 1 : i32
    %c0_48 = arith.constant 0 : index
    %c0_49 = arith.constant 0 : index
    %c0_50 = arith.constant 0 : index
    %59 = vector.load %arg15[%c0_48, %c0_49, %c0_50] : memref<4x8x1xf32, #tpu.memory_space<vmem>>, vector<4x8x1xf32>
    %60 = tpu.reciprocal %59 {approx = true} : vector<4x8x1xf32> -> vector<4x8x1xf32>
    %c0_51 = arith.constant 0 : index
    %c0_52 = arith.constant 0 : index
    %c0_53 = arith.constant 0 : index
    %61 = vector.load %arg16[%c0_51, %c0_52, %c0_53] : memref<4x8x8xf32, #tpu.memory_space<vmem>>, vector<4x8x8xf32>
    %62 = vector.broadcast %60 : vector<4x8x1xf32> to vector<4x8x8xf32>
    %63 = arith.mulf %61, %62 : vector<4x8x8xf32>
    %64 = vector.extract_strided_slice %63 {offsets = [0, 0, 0], sizes = [1, 8, 8], strides = [1, 1, 1]} : vector<4x8x8xf32> to vector<1x8x8xf32>
    %65 = vector.shape_cast %64 : vector<1x8x8xf32> to vector<8x8xf32>
    %66 = vector.extract_strided_slice %63 {offsets = [1, 0, 0], sizes = [1, 8, 8], strides = [1, 1, 1]} : vector<4x8x8xf32> to vector<1x8x8xf32>
    %67 = vector.shape_cast %66 : vector<1x8x8xf32> to vector<8x8xf32>
    %68 = vector.extract_strided_slice %63 {offsets = [2, 0, 0], sizes = [1, 8, 8], strides = [1, 1, 1]} : vector<4x8x8xf32> to vector<1x8x8xf32>
    %69 = vector.shape_cast %68 : vector<1x8x8xf32> to vector<8x8xf32>
    %70 = vector.extract_strided_slice %63 {offsets = [3, 0, 0], sizes = [1, 8, 8], strides = [1, 1, 1]} : vector<4x8x8xf32> to vector<1x8x8xf32>
    %71 = vector.shape_cast %70 : vector<1x8x8xf32> to vector<8x8xf32>
    %72 = tpu.concatenate %65, %67, %69, %71 in 1 : vector<8x8xf32>, vector<8x8xf32>, vector<8x8xf32>, vector<8x8xf32> -> vector<8x32xf32>
    %c0_54 = arith.constant 0 : index
    %c0_55 = arith.constant 0 : index
    %73 = vector.load %arg9[%c0_54, %c0_55] : memref<32x32xf32, #tpu.memory_space<vmem>>, vector<32x32xf32>
    %cst_56 = arith.constant dense<0.000000e+00> : vector<8x32xf32>
    %74 = tpu.matmul %72, %73, %cst_56 {dimension_numbers = #tpu.dot_dimension_numbers<[1], [0], [0], [1], [0, 0, 1, 1], [], []>} : vector<8x32xf32>, vector<32x32xf32>, vector<8x32xf32> -> vector<8x32xf32>
    %c0_57 = arith.constant 0 : index
    %c0_58 = arith.constant 0 : index
    %75 = vector.load %arg10[%c0_57, %c0_58] : memref<1x32xf32, #tpu.memory_space<vmem>>, vector<1x32xf32>
    %76 = vector.broadcast %75 : vector<1x32xf32> to vector<8x32xf32>
    %77 = arith.addf %74, %76 : vector<8x32xf32>
    %c0_59 = arith.constant 0 : index
    %c0_60 = arith.constant 0 : index
    %c0_61 = arith.constant 0 : index
    %78 = vector.load %arg11[%c0_59, %c0_60, %c0_61] : memref<1x8x32xf32, #tpu.memory_space<vmem>>, vector<1x8x32xf32>
    %79 = vector.shape_cast %78 : vector<1x8x32xf32> to vector<8x32xf32>
    %80 = vector.shape_cast %77 : vector<8x32xf32> to vector<1x8x32xf32>
    tpu.vector_store %arg11[%c0_59, %c0_60, %c0_61], %80 {strides = array<i32>} : memref<1x8x32xf32, #tpu.memory_space<vmem>>, vector<1x8x32xf32>,
    return
  }
  func.func @transform_0(%arg0: i32, %arg1: i32) -> (i32, i32, i32) {
    %c0_i32 = arith.constant 0 : i32
    %c0_i32_0 = arith.constant 0 : i32
    %c0_i32_1 = arith.constant 0 : i32
    return %arg0, %c0_i32, %c0_i32_0 : i32, i32, i32
  }
  func.func @transform_1(%arg0: i32, %arg1: i32) -> (i32, i32) {
    %c0_i32 = arith.constant 0 : i32
    %c0_i32_0 = arith.constant 0 : i32
    %c0_i32_1 = arith.constant 0 : i32
    return %c0_i32, %c0_i32_0 : i32, i32
  }
  func.func @transform_2(%arg0: i32, %arg1: i32) -> (i32, i32) {
    %c0_i32 = arith.constant 0 : i32
    %c0_i32_0 = arith.constant 0 : i32
    %c0_i32_1 = arith.constant 0 : i32
    return %c0_i32, %c0_i32_0 : i32, i32
  }
  func.func @transform_3(%arg0: i32, %arg1: i32) -> (i32, i32) {
    %c0_i32 = arith.constant 0 : i32
    %c0_i32_0 = arith.constant 0 : i32
    %c0_i32_1 = arith.constant 0 : i32
    return %c0_i32, %c0_i32_0 : i32, i32
  }
  func.func @transform_4(%arg0: i32, %arg1: i32) -> (i32, i32) {
    %c0_i32 = arith.constant 0 : i32
    %c0_i32_0 = arith.constant 0 : i32
    %c0_i32_1 = arith.constant 0 : i32
    return %c0_i32, %c0_i32_0 : i32, i32
  }
  func.func @transform_5(%arg0: i32, %arg1: i32) -> (i32, i32) {
    %c0_i32 = arith.constant 0 : i32
    %c0_i32_0 = arith.constant 0 : i32
    %c0_i32_1 = arith.constant 0 : i32
    return %c0_i32, %c0_i32_0 : i32, i32
  }
  func.func @transform_6(%arg0: i32, %arg1: i32) -> (i32, i32) {
    %c0_i32 = arith.constant 0 : i32
    %c0_i32_0 = arith.constant 0 : i32
    %c0_i32_1 = arith.constant 0 : i32
    return %c0_i32, %c0_i32_0 : i32, i32
  }
  func.func @transform_7(%arg0: i32, %arg1: i32) -> (i32, i32) {
    %c0_i32 = arith.constant 0 : i32
    %c0_i32_0 = arith.constant 0 : i32
    %c0_i32_1 = arith.constant 0 : i32
    return %c0_i32, %c0_i32_0 : i32, i32
  }
  func.func @transform_8(%arg0: i32, %arg1: i32) -> (i32, i32) {
    %c0_i32 = arith.constant 0 : i32
    %c0_i32_0 = arith.constant 0 : i32
    %c0_i32_1 = arith.constant 0 : i32
    return %c0_i32, %c0_i32_0 : i32, i32
  }
  func.func @transform_9(%arg0: i32, %arg1: i32) -> (i32, i32, i32) {
    %c0_i32 = arith.constant 0 : i32
    %c0_i32_0 = arith.constant 0 : i32
    return %arg0, %arg1, %c0_i32 : i32, i32, i32
  }
}

</mosaic_0001>

<llo_original>
// kernel: self_attention_gpt2.1
$region0: #{self_attention_gpt2.1}
  #allocation0 [shape = 'u32[]', space=smem, size = 0x4, offset = 0x4, fixed_abs, tag = 'smem constant byte address 0x4 - core index']
  #allocation1 [shape = 'u32[144,128]{1,0:T(1,128)}', space=vmem, size = 0x12000, scoped, tag = 'internal scratch']
  #allocation2 [shape = 'f32[4,8,8]{2,1,0:T(8,128)}', space=vmem, size = 0x4000, scoped, tag = 'scratch operand']
  #allocation3 [shape = 'f32[4,8,8]{2,1,0:T(8,128)}', space=vmem, size = 0x4000, scoped, tag = 'scratch operand']
  #allocation4 [shape = 'f32[4,8,1]{2,1,0:T(8,128)}', space=vmem, size = 0x4000, scoped, tag = 'scratch operand']
  #allocation5 [shape = 'f32[4,8,1]{2,1,0:T(8,128)}', space=vmem, size = 0x4000, scoped, tag = 'scratch operand']
  #allocation6 [shape = 'f32[4,8,8]{2,1,0:T(8,128)}', space=vmem, size = 0x4000, scoped, tag = 'scratch operand']
  %s0 = inlined_call_operand.vmem [shape: f32[2,8,32], index: 0, kind: input, shape index: {}]
  %s1 = inlined_call_operand.vmem [shape: f32[32,32], index: 1, kind: input, shape index: {}]
  %s2 = inlined_call_operand.vmem [shape: f32[1,32], index: 2, kind: input, shape index: {}]
  %s3 = inlined_call_operand.vmem [shape: f32[32,32], index: 3, kind: input, shape index: {}]
  %s4 = inlined_call_operand.vmem [shape: f32[1,32], index: 4, kind: input, shape index: {}]
  %s5 = inlined_call_operand.vmem [shape: f32[32,32], index: 5, kind: input, shape index: {}]
  %s6 = inlined_call_operand.vmem [shape: f32[1,32], index: 6, kind: input, shape index: {}]
  %s7 = inlined_call_operand.vmem [shape: f32[32,32], index: 7, kind: input, shape index: {}]
  %s8 = inlined_call_operand.vmem [shape: f32[1,32], index: 8, kind: input, shape index: {}]
  %s9 = inlined_call_operand.hbm [shape: f32[2,8,32], index: 9, kind: output, shape index: {}]
  %s10 = sld [smem:[#allocation0]]
  $region73: #{self_attention_gpt2.1} parent=0
    _
  %s12 = ssub.s32 1, %s10
  %s13 = scalar_select 0, %s12, %s10
  $region1: #{self_attention_gpt2.1} parent=0
    #allocation7 [shape = 'u8[8192]{0}', space=vmem, size = 0x2000, scoped, tag = 'output window, operand 0']
    #allocation8 [shape = 's32[2]{0}', space=sflag, size = 0x8, scoped, tag = 'scoped memory for self_attention_gpt2.1']
    %14 = vsyncpa [#allocation8], 0
    %s15 = scalar_lea.sflag [#allocation8], 1
    %16 = vsyncpa %s15, 0
    loop: start=0, step=1, limit=4
    $region2: #{self_attention_gpt2.1} parent=1 // loop_pre_header
      _
    $region3: #{self_attention_gpt2.1} parent=1 // loop_header
      %s18 = sphi 0, %s22
      %p19 = scmp.ge.s32.totalorder %s18, 4
      %s25 = sphi 0, %s37
      %s26 = sphi 0, %s33
      %s27 = sphi 0, %s25
      %s28 = sphi 0, %s26
      %s29 = sphi 0, %s27
      %s30 = sphi 0, %s28
      %s40 = sphi 0, %s42
      %s43 = sphi 0, %s40
      %s44 = sphi 0, %s43
      %s60 = sphi 0, %s44
      %s64 = sphi 0, %s64
      %s66 = sphi 0, %s64
      %s67 = sphi 0, %s66
      %s81 = sphi 0, %s67
      %s85 = sphi 0, %s85
      %s87 = sphi 0, %s85
      %s88 = sphi 0, %s87
      %s102 = sphi 0, %s88
      %s106 = sphi 0, %s106
      %s108 = sphi 0, %s106
      %s109 = sphi 0, %s108
      %s123 = sphi 0, %s109
      %s127 = sphi 0, %s127
      %s129 = sphi 0, %s127
      %s130 = sphi 0, %s129
      %s144 = sphi 0, %s130
      %s148 = sphi 0, %s148
      %s150 = sphi 0, %s148
      %s151 = sphi 0, %s150
      %s165 = sphi 0, %s151
      %s169 = sphi 0, %s169
      %s171 = sphi 0, %s169
      %s172 = sphi 0, %s171
      %s186 = sphi 0, %s172
      %s190 = sphi 0, %s190
      %s192 = sphi 0, %s190
      %s193 = sphi 0, %s192
      %s207 = sphi 0, %s193
      %s211 = sphi 0, %s211
      %s213 = sphi 0, %s211
      %s214 = sphi 0, %s213
      %s228 = sphi 0, %s214
      %s236 = sphi 0, %s238
      %s239 = sphi 0, %s236
      %s240 = sphi 0, %s239
      %s256 = sphi 0, %s240
    $region4: #{self_attention_gpt2.1} parent=1 // loop_header_branch
      %21 = sbr.rel (%p19) target = $region8
    $region5: #{self_attention_gpt2.1} parent=1 // loop_body
      %s23 = ssub.s32 %s18, 1
      %s24 = ssub.s32 %s18, 2
      %s31 = sadd.s32 1, %s26
      %p32 = scmp.ge.s32.totalorder %s31, 1
      %s33 = scalar_select %p32, 0, %s31
      %s34 = sadd.s32 1, %s25
      %s35 = scalar_select %p32, %s34, %s25
      %p36 = scmp.ge.s32.totalorder %s35, 2
      %s37 = scalar_select %p36, 0, %s35
      %s38 = ssub.s32 %s25, %s37
      %p39 = scmp.eq.s32.totalorder %s38, 0
      %s41 = sadd.s32 %s40, 1
      %s42 = scalar_select %p39, %s40, %s41
      %p45 = pneg %p39
      %p46 = scmp.eq.s32.totalorder %s18, 1
      %p47 = por %p45, %p46
      %p48 = scmp.ne.s32.totalorder %s40, %s43
      %p49 = scmp.eq.s32.totalorder %s18, 0
      %p50 = por %p48, %p49
      %p51 = scmp.ne.s32.totalorder %s40, %s43
      %p52 = scmp.eq.s32.totalorder %s23, 1
      %p53 = por %p51, %p52
      %p54 = scmp.ne.s32.totalorder %s43, %s44
      %p55 = scmp.eq.s32.totalorder %s23, 0
      %p56 = por %p54, %p55
      %p57 = scmp.ne.s32.totalorder %s43, %s44
      %p58 = scmp.eq.s32.totalorder %s24, 1
      %p59 = por %p57, %p58
      %p61 = scmp.ne.s32.totalorder %s44, %s60
      %p62 = scmp.eq.s32.totalorder %s24, 0
      %p63 = por %p61, %p62
      %s65 = sadd.s32 %s64, 1
      %p68 = scmp.eq.s32.totalorder %s18, 1
      %p69 = scmp.ne.s32.totalorder %s64, %s66
      %p70 = scmp.eq.s32.totalorder %s18, 0
      %p71 = por %p69, %p70
      %p72 = scmp.ne.s32.totalorder %s64, %s66
      %p73 = scmp.eq.s32.totalorder %s23, 1
      %p74 = por %p72, %p73
      %p75 = scmp.ne.s32.totalorder %s66, %s67
      %p76 = scmp.eq.s32.totalorder %s23, 0
      %p77 = por %p75, %p76
      %p78 = scmp.ne.s32.totalorder %s66, %s67
      %p79 = scmp.eq.s32.totalorder %s24, 1
      %p80 = por %p78, %p79
      %p82 = scmp.ne.s32.totalorder %s67, %s81
      %p83 = scmp.eq.s32.totalorder %s24, 0
      %p84 = por %p82, %p83
      %s86 = sadd.s32 %s85, 1
      %p89 = scmp.eq.s32.totalorder %s18, 1
      %p90 = scmp.ne.s32.totalorder %s85, %s87
      %p91 = scmp.eq.s32.totalorder %s18, 0
      %p92 = por %p90, %p91
      %p93 = scmp.ne.s32.totalorder %s85, %s87
      %p94 = scmp.eq.s32.totalorder %s23, 1
      %p95 = por %p93, %p94
      %p96 = scmp.ne.s32.totalorder %s87, %s88
      %p97 = scmp.eq.s32.totalorder %s23, 0
      %p98 = por %p96, %p97
      %p99 = scmp.ne.s32.totalorder %s87, %s88
      %p100 = scmp.eq.s32.totalorder %s24, 1
      %p101 = por %p99, %p100
      %p103 = scmp.ne.s32.totalorder %s88, %s102
      %p104 = scmp.eq.s32.totalorder %s24, 0
      %p105 = por %p103, %p104
      %s107 = sadd.s32 %s106, 1
      %p110 = scmp.eq.s32.totalorder %s18, 1
      %p111 = scmp.ne.s32.totalorder %s106, %s108
      %p112 = scmp.eq.s32.totalorder %s18, 0
      %p113 = por %p111, %p112
      %p114 = scmp.ne.s32.totalorder %s106, %s108
      %p115 = scmp.eq.s32.totalorder %s23, 1
      %p116 = por %p114, %p115
      %p117 = scmp.ne.s32.totalorder %s108, %s109
      %p118 = scmp.eq.s32.totalorder %s23, 0
      %p119 = por %p117, %p118
      %p120 = scmp.ne.s32.totalorder %s108, %s109
      %p121 = scmp.eq.s32.totalorder %s24, 1
      %p122 = por %p120, %p121
      %p124 = scmp.ne.s32.totalorder %s109, %s123
      %p125 = scmp.eq.s32.totalorder %s24, 0
      %p126 = por %p124, %p125
      %s128 = sadd.s32 %s127, 1
      %p131 = scmp.eq.s32.totalorder %s18, 1
      %p132 = scmp.ne.s32.totalorder %s127, %s129
      %p133 = scmp.eq.s32.totalorder %s18, 0
      %p134 = por %p132, %p133
      %p135 = scmp.ne.s32.totalorder %s127, %s129
      %p136 = scmp.eq.s32.totalorder %s23, 1
      %p137 = por %p135, %p136
      %p138 = scmp.ne.s32.totalorder %s129, %s130
      %p139 = scmp.eq.s32.totalorder %s23, 0
      %p140 = por %p138, %p139
      %p141 = scmp.ne.s32.totalorder %s129, %s130
      %p142 = scmp.eq.s32.totalorder %s24, 1
      %p143 = por %p141, %p142
      %p145 = scmp.ne.s32.totalorder %s130, %s144
      %p146 = scmp.eq.s32.totalorder %s24, 0
      %p147 = por %p145, %p146
      %s149 = sadd.s32 %s148, 1
      %p152 = scmp.eq.s32.totalorder %s18, 1
      %p153 = scmp.ne.s32.totalorder %s148, %s150
      %p154 = scmp.eq.s32.totalorder %s18, 0
      %p155 = por %p153, %p154
      %p156 = scmp.ne.s32.totalorder %s148, %s150
      %p157 = scmp.eq.s32.totalorder %s23, 1
      %p158 = por %p156, %p157
      %p159 = scmp.ne.s32.totalorder %s150, %s151
      %p160 = scmp.eq.s32.totalorder %s23, 0
      %p161 = por %p159, %p160
      %p162 = scmp.ne.s32.totalorder %s150, %s151
      %p163 = scmp.eq.s32.totalorder %s24, 1
      %p164 = por %p162, %p163
      %p166 = scmp.ne.s32.totalorder %s151, %s165
      %p167 = scmp.eq.s32.totalorder %s24, 0
      %p168 = por %p166, %p167
      %s170 = sadd.s32 %s169, 1
      %p173 = scmp.eq.s32.totalorder %s18, 1
      %p174 = scmp.ne.s32.totalorder %s169, %s171
      %p175 = scmp.eq.s32.totalorder %s18, 0
      %p176 = por %p174, %p175
      %p177 = scmp.ne.s32.totalorder %s169, %s171
      %p178 = scmp.eq.s32.totalorder %s23, 1
      %p179 = por %p177, %p178
      %p180 = scmp.ne.s32.totalorder %s171, %s172
      %p181 = scmp.eq.s32.totalorder %s23, 0
      %p182 = por %p180, %p181
      %p183 = scmp.ne.s32.totalorder %s171, %s172
      %p184 = scmp.eq.s32.totalorder %s24, 1
      %p185 = por %p183, %p184
      %p187 = scmp.ne.s32.totalorder %s172, %s186
      %p188 = scmp.eq.s32.totalorder %s24, 0
      %p189 = por %p187, %p188
      %s191 = sadd.s32 %s190, 1
      %p194 = scmp.eq.s32.totalorder %s18, 1
      %p195 = scmp.ne.s32.totalorder %s190, %s192
      %p196 = scmp.eq.s32.totalorder %s18, 0
      %p197 = por %p195, %p196
      %p198 = scmp.ne.s32.totalorder %s190, %s192
      %p199 = scmp.eq.s32.totalorder %s23, 1
      %p200 = por %p198, %p199
      %p201 = scmp.ne.s32.totalorder %s192, %s193
      %p202 = scmp.eq.s32.totalorder %s23, 0
      %p203 = por %p201, %p202
      %p204 = scmp.ne.s32.totalorder %s192, %s193
      %p205 = scmp.eq.s32.totalorder %s24, 1
      %p206 = por %p204, %p205
      %p208 = scmp.ne.s32.totalorder %s193, %s207
      %p209 = scmp.eq.s32.totalorder %s24, 0
      %p210 = por %p208, %p209
      %s212 = sadd.s32 %s211, 1
      %p215 = scmp.eq.s32.totalorder %s18, 1
      %p216 = scmp.ne.s32.totalorder %s211, %s213
      %p217 = scmp.eq.s32.totalorder %s18, 0
      %p218 = por %p216, %p217
      %p219 = scmp.ne.s32.totalorder %s211, %s213
      %p220 = scmp.eq.s32.totalorder %s23, 1
      %p221 = por %p219, %p220
      %p222 = scmp.ne.s32.totalorder %s213, %s214
      %p223 = scmp.eq.s32.totalorder %s23, 0
      %p224 = por %p222, %p223
      %p225 = scmp.ne.s32.totalorder %s213, %s214
      %p226 = scmp.eq.s32.totalorder %s24, 1
      %p227 = por %p225, %p226
      %p229 = scmp.ne.s32.totalorder %s214, %s228
      %p230 = scmp.eq.s32.totalorder %s24, 0
      %p231 = por %p229, %p230
      %s232 = ssub.s32 %s25, %s37
      %s233 = ssub.s32 %s26, %s33
      %s234 = sor.u32 %s232, %s233
      %p235 = scmp.eq.s32.totalorder %s234, 0
      %s237 = sadd.s32 %s236, 1
      %s238 = scalar_select %p235, %s236, %s237
      %p241 = pneg %p235
      %p242 = scmp.eq.s32.totalorder %s18, 1
      %p243 = por %p241, %p242
      %p244 = scmp.ne.s32.totalorder %s236, %s239
      %p245 = scmp.eq.s32.totalorder %s18, 0
      %p246 = por %p244, %p245
      %p247 = scmp.ne.s32.totalorder %s236, %s239
      %p248 = scmp.eq.s32.totalorder %s23, 1
      %p249 = por %p247, %p248
      %p250 = scmp.ne.s32.totalorder %s239, %s240
      %p251 = scmp.eq.s32.totalorder %s23, 0
      %p252 = por %p250, %p251
      %p253 = scmp.ne.s32.totalorder %s239, %s240
      %p254 = scmp.eq.s32.totalorder %s24, 1
      %p255 = por %p253, %p254
      %p257 = scmp.ne.s32.totalorder %s240, %s256
      %p258 = scmp.eq.s32.totalorder %s24, 0
      %p259 = por %p257, %p258
      %p260 = scmp.le.s32.totalorder 1, %s18
      %p261 = scmp.lt.s32.totalorder %s18, 3
      %p262 = pnand %p260, %p261
      %p263 = pneg %p262
      // Predicated region
      $region9: #{self_attention_gpt2.1} parent=5 // pred_check
        _
      $region10: #{self_attention_gpt2.1} parent=5 // pred_check_branch
        %265 = sbr.rel (%p262) target = $region12
      $region11: #{self_attention_gpt2.1} parent=5 // pred_region
        %s266 = ssub.s32 %s18, 1
        // Predicated region
        $region13: #{self_attention_gpt2.1} parent=11 // pred_check
          %p267 = pneg %p77
        $region14: #{self_attention_gpt2.1} parent=11 // pred_check_branch
          %269 = sbr.rel (%p267) target = $region16
        $region15: #{self_attention_gpt2.1} parent=11 // pred_region
          _
        $region16: #{self_attention_gpt2.1} parent=11 // pred_fallthru
          _
        // Predicated region
        $region17: #{self_attention_gpt2.1} parent=11 // pred_check
          %p270 = pneg %p98
        $region18: #{self_attention_gpt2.1} parent=11 // pred_check_branch
          %272 = sbr.rel (%p270) target = $region20
        $region19: #{self_attention_gpt2.1} parent=11 // pred_region
          _
        $region20: #{self_attention_gpt2.1} parent=11 // pred_fallthru
          _
        // Predicated region
        $region21: #{self_attention_gpt2.1} parent=11 // pred_check
          %p273 = pneg %p119
        $region22: #{self_attention_gpt2.1} parent=11 // pred_check_branch
          %275 = sbr.rel (%p273) target = $region24
        $region23: #{self_attention_gpt2.1} parent=11 // pred_region
          _
        $region24: #{self_attention_gpt2.1} parent=11 // pred_fallthru
          _
        // Predicated region
        $region25: #{self_attention_gpt2.1} parent=11 // pred_check
          %p276 = pneg %p140
        $region26: #{self_attention_gpt2.1} parent=11 // pred_check_branch
          %278 = sbr.rel (%p276) target = $region28
        $region27: #{self_attention_gpt2.1} parent=11 // pred_region
          _
        $region28: #{self_attention_gpt2.1} parent=11 // pred_fallthru
          _
        // Predicated region
        $region29: #{self_attention_gpt2.1} parent=11 // pred_check
          %p279 = pneg %p161
        $region30: #{self_attention_gpt2.1} parent=11 // pred_check_branch
          %281 = sbr.rel (%p279) target = $region32
        $region31: #{self_attention_gpt2.1} parent=11 // pred_region
          _
        $region32: #{self_attention_gpt2.1} parent=11 // pred_fallthru
          _
        // Predicated region
        $region33: #{self_attention_gpt2.1} parent=11 // pred_check
          %p282 = pneg %p182
        $region34: #{self_attention_gpt2.1} parent=11 // pred_check_branch
          %284 = sbr.rel (%p282) target = $region36
        $region35: #{self_attention_gpt2.1} parent=11 // pred_region
          _
        $region36: #{self_attention_gpt2.1} parent=11 // pred_fallthru
          _
        // Predicated region
        $region37: #{self_attention_gpt2.1} parent=11 // pred_check
          %p285 = pneg %p203
        $region38: #{self_attention_gpt2.1} parent=11 // pred_check_branch
          %287 = sbr.rel (%p285) target = $region40
        $region39: #{self_attention_gpt2.1} parent=11 // pred_region
          _
        $region40: #{self_attention_gpt2.1} parent=11 // pred_fallthru
          _
        // Predicated region
        $region41: #{self_attention_gpt2.1} parent=11 // pred_check
          %p288 = pneg %p224
        $region42: #{self_attention_gpt2.1} parent=11 // pred_check_branch
          %290 = sbr.rel (%p288) target = $region44
        $region43: #{self_attention_gpt2.1} parent=11 // pred_region
          _
        $region44: #{self_attention_gpt2.1} parent=11 // pred_fallthru
          _
      $region12: #{self_attention_gpt2.1} parent=5 // pred_fallthru
        _
      %p291 = scmp.lt.s32.totalorder %s18, 2
      // Predicated region
      $region45: #{self_attention_gpt2.1} parent=5 // pred_check
        %p292 = pneg %p291
      $region46: #{self_attention_gpt2.1} parent=5 // pred_check_branch
        %294 = sbr.rel (%p292) target = $region48
      $region47: #{self_attention_gpt2.1} parent=5 // pred_region
        // Predicated region
        $region49: #{self_attention_gpt2.1} parent=47 // pred_check
          %p295 = pneg %p50
        $region50: #{self_attention_gpt2.1} parent=47 // pred_check_branch
          %297 = sbr.rel (%p295) target = $region52
        $region51: #{self_attention_gpt2.1} parent=47 // pred_region
          %p298 = scmp.lt.s32.totalorder %s25, 1
          %s299 = scalar_select %p298, %s25, 1
          %s300 = smul.addr %s299, 8
          %s301 = scalar_lea.vmem %s0, %s300
        $region52: #{self_attention_gpt2.1} parent=47 // pred_fallthru
          _
      $region48: #{self_attention_gpt2.1} parent=5 // pred_fallthru
        _
      %p302 = scmp.le.s32.totalorder 1, %s18
      %p303 = scmp.lt.s32.totalorder %s18, 3
      %p304 = pnand %p302, %p303
      %p305 = pneg %p304
      // Predicated region
      $region53: #{self_attention_gpt2.1} parent=5 // pred_check
        _
      $region54: #{self_attention_gpt2.1} parent=5 // pred_check_branch
        %307 = sbr.rel (%p304) target = $region56
      $region55: #{self_attention_gpt2.1} parent=5 // pred_region
        %s308 = ssub.s32 %s18, 1
        %p309 = scmp.lt.s32.totalorder %s27, 1
        %s310 = scalar_select %p309, %s27, 1
        %s311 = smul.addr %s310, 8
        %s312 = scalar_lea.vmem %s0, %s311
        %p313 = pneg %p56
        %p314 = pneg %p53
        %p315 = pneg %p77
        %p316 = pneg %p74
        %p317 = pneg %p98
        %p318 = pneg %p95
        %p319 = pneg %p119
        %p320 = pneg %p116
        %p321 = pneg %p140
        %p322 = pneg %p137
        %p323 = pneg %p161
        %p324 = pneg %p158
        %p325 = pneg %p182
        %p326 = pneg %p179
        %p327 = pneg %p203
        %p328 = pneg %p200
        %p329 = pneg %p224
        %p330 = pneg %p221
        %p331 = pneg %p252
        %p332 = pneg %p249
        %s333 = sand.u32 %s239, 1
        %s334 = scalar_lea.sflag [#allocation8], %s333
        %s335 = sand.u32 %s239, 1
        %s336 = smul.addr %s335, 8
        %s337 = scalar_lea.vmem [#allocation7], %s336
        %p338 = scmp.lt.s32.totalorder %s27, 1
        %s339 = scalar_select %p338, %s27, 1
        %s340 = smul.addr %s339, 8
        %s341 = scalar_lea.vmem %s0, %s340
        %p342 = scmp.eq.s32.totalorder %s28, 0
        // Predicated region
        $region57: #{self_attention_gpt2.1} parent=55 // pred_check
          %p343 = pneg %p342
        $region58: #{self_attention_gpt2.1} parent=55 // pred_check_branch
          %345 = sbr.rel (%p343) target = $region60
        $region59: #{self_attention_gpt2.1} parent=55 // pred_region
          %v346 = vld [vmem:[%s341] sm:$0xff]
          %v347 = vld [vmem:[%s3] sm:$0xff]
          %v348 = vld [vmem:[%s3 + $0x8] sm:$0xff]
          %v349 = vld [vmem:[%s3 + $0x10] sm:$0xff]
          %v350 = vld [vmem:[%s3 + $0x18] sm:$0xff]
          %v351 = vld [vmem:[%s4] sm:$0x1]
          %v353 = vlaneseq
          %v354 = vshrl.u32 %v353, 7
          %v355 = vsub.s32 0, %v354
          %v356 = vrot.slane %v351, %v355
          %vm358 = vcmask 261120
          %v360 = vsel %vm358, %v346, 0
          %362 = vmatprep.subr.mxu0 0.0
          %363 = vmatpush1.msra.mxu0 %v347
          %364 = vmatprep.subr.mxu0 0.0
          %365 = vmatpush1.msra.mxu0 %v348
          %366 = vmatprep.subr.mxu0 0.0
          %367 = vmatpush1.msra.mxu0 %v349
          %368 = vmatprep.subr.mxu0 0.0
          %369 = vmatpush1.msra.mxu0 %v350
          %370 = vmatprep.subr.mxu0 0.0
          %371 = vmatpush1.msra.mxu0 0.0
          %372 = vmatprep.subr.mxu0 0.0
          %373 = vmatpush1.msra.mxu0 0.0
          %374 = vmatprep.subr.mxu0 0.0
          %375 = vmatpush1.msra.mxu0 0.0
          %376 = vmatprep.subr.mxu0 0.0
          %377 = vmatpush1.msra.mxu0 0.0
          %378 = vmatprep.subr.mxu0 0.0
          %379 = vmatpush1.msra.mxu0 0.0
          %380 = vmatprep.subr.mxu0 0.0
          %381 = vmatpush1.msra.mxu0 0.0
          %382 = vmatprep.subr.mxu0 0.0
          %383 = vmatpush1.msra.mxu0 0.0
          %384 = vmatprep.subr.mxu0 0.0
          %385 = vmatpush1.msra.mxu0 0.0
          %386 = vmatprep.subr.mxu0 0.0
          %387 = vmatpush1.msra.mxu0 0.0
          %388 = vmatprep.subr.mxu0 0.0
          %389 = vmatpush1.msra.mxu0 0.0
          %390 = vmatprep.subr.mxu0 0.0
          %391 = vmatpush1.msra.mxu0 0.0
          %392 = vmatprep.subr.mxu0 0.0
          %393 = vmatpush1.msra.mxu0 0.0
          %394 = vmatprep.subr.mxu0 0.0
          %395 = vmatpush1.msra.mxu0 0.0
          %396 = vmatprep.subr.mxu0 0.0
          %397 = vmatpush1.msra.mxu0 0.0
          %398 = vmatprep.subr.mxu0 0.0
          %399 = vmatpush1.msra.mxu0 0.0
          %400 = vmatprep.subr.mxu0 0.0
          %401 = vmatpush1.msra.mxu0 0.0
          %402 = vmatprep.subr.mxu0 0.0
          %403 = vmatpush1.msra.mxu0 0.0
          %404 = vmatprep.subr.mxu0 0.0
          %405 = vmatpush1.msra.mxu0 0.0
          %406 = vmatprep.subr.mxu0 0.0
          %407 = vmatpush1.msra.mxu0 0.0
          %408 = vmatprep.subr.mxu0 0.0
          %409 = vmatpush1.msra.mxu0 0.0
          %410 = vmatprep.subr.mxu0 0.0
          %411 = vmatpush1.msra.mxu0 0.0
          %412 = vmatprep.subr.mxu0 0.0
          %413 = vmatpush1.msra.mxu0 0.0
          %414 = vmatprep.subr.mxu0 0.0
          %415 = vmatpush1.msra.mxu0 0.0
          %416 = vmatprep.subr.mxu0 0.0
          %417 = vmatpush1.msra.mxu0 0.0
          %418 = vmatprep.subr.mxu0 0.0
          %419 = vmatpush1.msra.mxu0 0.0
          %420 = vmatprep.subr.mxu0 0.0
          %421 = vmatpush1.msra.mxu0 0.0
          %422 = vmatprep.subr.mxu0 0.0
          %423 = vmatpush1.msra.mxu0 0.0
          %424 = vmatprep.subr.mxu0 0.0
          %425 = vmatpush1.msra.mxu0 0.0
          %426 = vmatprep.mubr.f32.mxu0 0.0
          %427 = vmatmul.mubr.f32.gmra.mrb[0].mxu0 %v360
          %v428 = vpop.f32.mrb[0].mxu0
          %v429 = vadd.f32 %v356, %v428
          %v430 = vpop.f32.mrb[0].mxu0
          %431 = vdwg.mxu0
          %v432 = vld [vmem:[%s5] sm:$0xff]
          %v433 = vld [vmem:[%s5 + $0x8] sm:$0xff]
          %v434 = vld [vmem:[%s5 + $0x10] sm:$0xff]
          %v435 = vld [vmem:[%s5 + $0x18] sm:$0xff]
          %v436 = vld [vmem:[%s6] sm:$0x1]
          %v438 = vlaneseq
          %v439 = vshrl.u32 %v438, 7
          %v440 = vsub.s32 0, %v439
          %v441 = vrot.slane %v436, %v440
          %443 = vmatprep.subr.mxu0 0.0
          %444 = vmatpush1.msra.mxu0 %v432
          %445 = vmatprep.subr.mxu0 0.0
          %446 = vmatpush1.msra.mxu0 %v433
          %447 = vmatprep.subr.mxu0 0.0
          %448 = vmatpush1.msra.mxu0 %v434
          %449 = vmatprep.subr.mxu0 0.0
          %450 = vmatpush1.msra.mxu0 %v435
          %451 = vmatprep.subr.mxu0 0.0
          %452 = vmatpush1.msra.mxu0 0.0
          %453 = vmatprep.subr.mxu0 0.0
          %454 = vmatpush1.msra.mxu0 0.0
          %455 = vmatprep.subr.mxu0 0.0
          %456 = vmatpush1.msra.mxu0 0.0
          %457 = vmatprep.subr.mxu0 0.0
          %458 = vmatpush1.msra.mxu0 0.0
          %459 = vmatprep.subr.mxu0 0.0
          %460 = vmatpush1.msra.mxu0 0.0
          %461 = vmatprep.subr.mxu0 0.0
          %462 = vmatpush1.msra.mxu0 0.0
          %463 = vmatprep.subr.mxu0 0.0
          %464 = vmatpush1.msra.mxu0 0.0
          %465 = vmatprep.subr.mxu0 0.0
          %466 = vmatpush1.msra.mxu0 0.0
          %467 = vmatprep.subr.mxu0 0.0
          %468 = vmatpush1.msra.mxu0 0.0
          %469 = vmatprep.subr.mxu0 0.0
          %470 = vmatpush1.msra.mxu0 0.0
          %471 = vmatprep.subr.mxu0 0.0
          %472 = vmatpush1.msra.mxu0 0.0
          %473 = vmatprep.subr.mxu0 0.0
          %474 = vmatpush1.msra.mxu0 0.0
          %475 = vmatprep.subr.mxu0 0.0
          %476 = vmatpush1.msra.mxu0 0.0
          %477 = vmatprep.subr.mxu0 0.0
          %478 = vmatpush1.msra.mxu0 0.0
          %479 = vmatprep.subr.mxu0 0.0
          %480 = vmatpush1.msra.mxu0 0.0
          %481 = vmatprep.subr.mxu0 0.0
          %482 = vmatpush1.msra.mxu0 0.0
          %483 = vmatprep.subr.mxu0 0.0
          %484 = vmatpush1.msra.mxu0 0.0
          %485 = vmatprep.subr.mxu0 0.0
          %486 = vmatpush1.msra.mxu0 0.0
          %487 = vmatprep.subr.mxu0 0.0
          %488 = vmatpush1.msra.mxu0 0.0
          %489 = vmatprep.subr.mxu0 0.0
          %490 = vmatpush1.msra.mxu0 0.0
          %491 = vmatprep.subr.mxu0 0.0
          %492 = vmatpush1.msra.mxu0 0.0
          %493 = vmatprep.subr.mxu0 0.0
          %494 = vmatpush1.msra.mxu0 0.0
          %495 = vmatprep.subr.mxu0 0.0
          %496 = vmatpush1.msra.mxu0 0.0
          %497 = vmatprep.subr.mxu0 0.0
          %498 = vmatpush1.msra.mxu0 0.0
          %499 = vmatprep.subr.mxu0 0.0
          %500 = vmatpush1.msra.mxu0 0.0
          %501 = vmatprep.subr.mxu0 0.0
          %502 = vmatpush1.msra.mxu0 0.0
          %503 = vmatprep.subr.mxu0 0.0
          %504 = vmatpush1.msra.mxu0 0.0
          %505 = vmatprep.subr.mxu0 0.0
          %506 = vmatpush1.msra.mxu0 0.0
          %507 = vmatprep.mubr.f32.mxu0 0.0
          %508 = vmatmul.mubr.f32.gmra.mrb[0].mxu0 %v360
          %v509 = vpop.f32.mrb[0].mxu0
          %v510 = vadd.f32 %v441, %v509
          %v511 = vpop.f32.mrb[0].mxu0
          %512 = vdwg.mxu0
          %514 = vrot.lane.b32.xlu0 %v429, 120
          %v515 = vpop.permute.xlu0 %514
          %517 = vrot.lane.b32.xlu0 %v429, 112
          %v518 = vpop.permute.xlu0 %517
          %520 = vrot.lane.b32.xlu0 %v429, 104
          %v521 = vpop.permute.xlu0 %520
          %vm523 = vcmask 64512
          %524 = vst.msk [vmem:[#allocation2] sm:$0xff] %vm523, %v429
          %525 = vst.msk [vmem:[#allocation2 + $0x8] sm:$0xff] %vm523, %v515
          %526 = vst.msk [vmem:[#allocation2 + $0x10] sm:$0xff] %vm523, %v518
          %527 = vst.msk [vmem:[#allocation2 + $0x18] sm:$0xff] %vm523, %v521
          %529 = vrot.lane.b32.xlu0 %v510, 120
          %v530 = vpop.permute.xlu0 %529
          %532 = vrot.lane.b32.xlu0 %v510, 112
          %v533 = vpop.permute.xlu0 %532
          %535 = vrot.lane.b32.xlu0 %v510, 104
          %v536 = vpop.permute.xlu0 %535
          %538 = vst.msk [vmem:[#allocation3] sm:$0xff] %vm523, %v510
          %539 = vst.msk [vmem:[#allocation3 + $0x8] sm:$0xff] %vm523, %v530
          %540 = vst.msk [vmem:[#allocation3 + $0x10] sm:$0xff] %vm523, %v533
          %541 = vst.msk [vmem:[#allocation3 + $0x18] sm:$0xff] %vm523, %v536
        $region60: #{self_attention_gpt2.1} parent=55 // pred_fallthru
          _
        %s542 = smul.u32 %s28, 8
        %s543 = scalar_lea.vmem %s341, %s542
        %v544 = vld [vmem:[%s543] sm:$0xff]
        %v545 = vld [vmem:[%s1] sm:$0xff]
        %v546 = vld [vmem:[%s1 + $0x8] sm:$0xff]
        %v547 = vld [vmem:[%s1 + $0x10] sm:$0xff]
        %v548 = vld [vmem:[%s1 + $0x18] sm:$0xff]
        %v549 = vld [vmem:[%s2] sm:$0x1]
        %v551 = vlaneseq
        %v552 = vshrl.u32 %v551, 7
        %v553 = vsub.s32 0, %v552
        %v554 = vrot.slane %v549, %v553
        %vm556 = vcmask 261120
        %v558 = vsel %vm556, %v544, 0
        %560 = vmatprep.subr.mxu0 0.0
        %561 = vmatpush1.msra.mxu0 %v545
        %562 = vmatprep.subr.mxu0 0.0
        %563 = vmatpush1.msra.mxu0 %v546
        %564 = vmatprep.subr.mxu0 0.0
        %565 = vmatpush1.msra.mxu0 %v547
        %566 = vmatprep.subr.mxu0 0.0
        %567 = vmatpush1.msra.mxu0 %v548
        %568 = vmatprep.subr.mxu0 0.0
        %569 = vmatpush1.msra.mxu0 0.0
        %570 = vmatprep.subr.mxu0 0.0
        %571 = vmatpush1.msra.mxu0 0.0
        %572 = vmatprep.subr.mxu0 0.0
        %573 = vmatpush1.msra.mxu0 0.0
        %574 = vmatprep.subr.mxu0 0.0
        %575 = vmatpush1.msra.mxu0 0.0
        %576 = vmatprep.subr.mxu0 0.0
        %577 = vmatpush1.msra.mxu0 0.0
        %578 = vmatprep.subr.mxu0 0.0
        %579 = vmatpush1.msra.mxu0 0.0
        %580 = vmatprep.subr.mxu0 0.0
        %581 = vmatpush1.msra.mxu0 0.0
        %582 = vmatprep.subr.mxu0 0.0
        %583 = vmatpush1.msra.mxu0 0.0
        %584 = vmatprep.subr.mxu0 0.0
        %585 = vmatpush1.msra.mxu0 0.0
        %586 = vmatprep.subr.mxu0 0.0
        %587 = vmatpush1.msra.mxu0 0.0
        %588 = vmatprep.subr.mxu0 0.0
        %589 = vmatpush1.msra.mxu0 0.0
        %590 = vmatprep.subr.mxu0 0.0
        %591 = vmatpush1.msra.mxu0 0.0
        %592 = vmatprep.subr.mxu0 0.0
        %593 = vmatpush1.msra.mxu0 0.0
        %594 = vmatprep.subr.mxu0 0.0
        %595 = vmatpush1.msra.mxu0 0.0
        %596 = vmatprep.subr.mxu0 0.0
        %597 = vmatpush1.msra.mxu0 0.0
        %598 = vmatprep.subr.mxu0 0.0
        %599 = vmatpush1.msra.mxu0 0.0
        %600 = vmatprep.subr.mxu0 0.0
        %601 = vmatpush1.msra.mxu0 0.0
        %602 = vmatprep.subr.mxu0 0.0
        %603 = vmatpush1.msra.mxu0 0.0
        %604 = vmatprep.subr.mxu0 0.0
        %605 = vmatpush1.msra.mxu0 0.0
        %606 = vmatprep.subr.mxu0 0.0
        %607 = vmatpush1.msra.mxu0 0.0
        %608 = vmatprep.subr.mxu0 0.0
        %609 = vmatpush1.msra.mxu0 0.0
        %610 = vmatprep.subr.mxu0 0.0
        %611 = vmatpush1.msra.mxu0 0.0
        %612 = vmatprep.subr.mxu0 0.0
        %613 = vmatpush1.msra.mxu0 0.0
        %614 = vmatprep.subr.mxu0 0.0
        %615 = vmatpush1.msra.mxu0 0.0
        %616 = vmatprep.subr.mxu0 0.0
        %617 = vmatpush1.msra.mxu0 0.0
        %618 = vmatprep.subr.mxu0 0.0
        %619 = vmatpush1.msra.mxu0 0.0
        %620 = vmatprep.subr.mxu0 0.0
        %621 = vmatpush1.msra.mxu0 0.0
        %622 = vmatprep.subr.mxu0 0.0
        %623 = vmatpush1.msra.mxu0 0.0
        %624 = vmatprep.mubr.f32.mxu0 0.0
        %625 = vmatmul.mubr.f32.gmra.mrb[0].mxu0 %v558
        %v626 = vpop.f32.mrb[0].mxu0
        %v627 = vadd.f32 %v554, %v626
        %v628 = vpop.f32.mrb[0].mxu0
        %629 = vdwg.mxu0
        %631 = vrot.lane.b32.xlu0 %v627, 120
        %v632 = vpop.permute.xlu0 %631
        %633 = vrot.lane.b32.xlu0 %v627, 112
        %v634 = vpop.permute.xlu0 %633
        %635 = vrot.lane.b32.xlu0 %v627, 104
        %v636 = vpop.permute.xlu0 %635
        %vm637 = vcmask 7168
        %638 = vst.msk [vmem:[#allocation4] sm:$0xff] %vm637, -1e+30
        %639 = vst.msk [vmem:[#allocation4 + $0x8] sm:$0xff] %vm637, -1e+30
        %640 = vst.msk [vmem:[#allocation4 + $0x10] sm:$0xff] %vm637, -1e+30
        %641 = vst.msk [vmem:[#allocation4 + $0x18] sm:$0xff] %vm637, -1e+30
        %642 = vst.msk [vmem:[#allocation5] sm:$0xff] %vm637, 0.0
        %643 = vst.msk [vmem:[#allocation5 + $0x8] sm:$0xff] %vm637, 0.0
        %644 = vst.msk [vmem:[#allocation5 + $0x10] sm:$0xff] %vm637, 0.0
        %645 = vst.msk [vmem:[#allocation5 + $0x18] sm:$0xff] %vm637, 0.0
        %vm646 = vcmask 64512
        %647 = vst.msk [vmem:[#allocation6] sm:$0xff] %vm646, 0.0
        %648 = vst.msk [vmem:[#allocation6 + $0x8] sm:$0xff] %vm646, 0.0
        %649 = vst.msk [vmem:[#allocation6 + $0x10] sm:$0xff] %vm646, 0.0
        %650 = vst.msk [vmem:[#allocation6 + $0x18] sm:$0xff] %vm646, 0.0
        %v651 = vld [vmem:[#allocation2] sm:$0xff]
        %v652 = vld [vmem:[#allocation2 + $0x8] sm:$0xff]
        %v653 = vld [vmem:[#allocation2 + $0x10] sm:$0xff]
        %v654 = vld [vmem:[#allocation2 + $0x18] sm:$0xff]
        %v655 = vld [vmem:[#allocation3] sm:$0xff]
        %v656 = vld [vmem:[#allocation3 + $0x8] sm:$0xff]
        %v657 = vld [vmem:[#allocation3 + $0x10] sm:$0xff]
        %v658 = vld [vmem:[#allocation3 + $0x18] sm:$0xff]
        %v659 = vsel %vm646, %v627, 0
        %v662 = vsel %vm646, %v651, 0
        %664 = vmatprep.subr.mxu0 0.0
        %665 = vmatpush1.xpose.msra.mxu0 %v662
        %666 = vmatprep.subr.mxu0 0.0
        %667 = vmatpush1.xpose.msra.mxu0 0.0
        %668 = vmatprep.subr.mxu0 0.0
        %669 = vmatpush1.xpose.msra.mxu0 0.0
        %670 = vmatprep.subr.mxu0 0.0
        %671 = vmatpush1.xpose.msra.mxu0 0.0
        %672 = vmatprep.subr.mxu0 0.0
        %673 = vmatpush1.xpose.msra.mxu0 0.0
        %674 = vmatprep.subr.mxu0 0.0
        %675 = vmatpush1.xpose.msra.mxu0 0.0
        %676 = vmatprep.subr.mxu0 0.0
        %677 = vmatpush1.xpose.msra.mxu0 0.0
        %678 = vmatprep.subr.mxu0 0.0
        %679 = vmatpush1.xpose.msra.mxu0 0.0
        %680 = vmatprep.subr.mxu0 0.0
        %681 = vmatpush1.xpose.msra.mxu0 0.0
        %682 = vmatprep.subr.mxu0 0.0
        %683 = vmatpush1.xpose.msra.mxu0 0.0
        %684 = vmatprep.subr.mxu0 0.0
        %685 = vmatpush1.xpose.msra.mxu0 0.0
        %686 = vmatprep.subr.mxu0 0.0
        %687 = vmatpush1.xpose.msra.mxu0 0.0
        %688 = vmatprep.subr.mxu0 0.0
        %689 = vmatpush1.xpose.msra.mxu0 0.0
        %690 = vmatprep.subr.mxu0 0.0
        %691 = vmatpush1.xpose.msra.mxu0 0.0
        %692 = vmatprep.subr.mxu0 0.0
        %693 = vmatpush1.xpose.msra.mxu0 0.0
        %694 = vmatprep.subr.mxu0 0.0
        %695 = vmatpush1.xpose.msra.mxu0 0.0
        %696 = vmatprep.subr.mxu0 0.0
        %697 = vmatpush1.xpose.msra.mxu0 0.0
        %698 = vmatprep.subr.mxu0 0.0
        %699 = vmatpush1.xpose.msra.mxu0 0.0
        %700 = vmatprep.subr.mxu0 0.0
        %701 = vmatpush1.xpose.msra.mxu0 0.0
        %702 = vmatprep.subr.mxu0 0.0
        %703 = vmatpush1.xpose.msra.mxu0 0.0
        %704 = vmatprep.subr.mxu0 0.0
        %705 = vmatpush1.xpose.msra.mxu0 0.0
        %706 = vmatprep.subr.mxu0 0.0
        %707 = vmatpush1.xpose.msra.mxu0 0.0
        %708 = vmatprep.subr.mxu0 0.0
        %709 = vmatpush1.xpose.msra.mxu0 0.0
        %710 = vmatprep.subr.mxu0 0.0
        %711 = vmatpush1.xpose.msra.mxu0 0.0
        %712 = vmatprep.subr.mxu0 0.0
        %713 = vmatpush1.xpose.msra.mxu0 0.0
        %714 = vmatprep.subr.mxu0 0.0
        %715 = vmatpush1.xpose.msra.mxu0 0.0
        %716 = vmatprep.subr.mxu0 0.0
        %717 = vmatpush1.xpose.msra.mxu0 0.0
        %718 = vmatprep.subr.mxu0 0.0
        %719 = vmatpush1.xpose.msra.mxu0 0.0
        %720 = vmatprep.subr.mxu0 0.0
        %721 = vmatpush1.xpose.msra.mxu0 0.0
        %722 = vmatprep.subr.mxu0 0.0
        %723 = vmatpush1.xpose.msra.mxu0 0.0
        %724 = vmatprep.subr.mxu0 0.0
        %725 = vmatpush1.xpose.msra.mxu0 0.0
        %726 = vmatprep.subr.mxu0 0.0
        %727 = vmatpush1.xpose.msra.mxu0 0.0
        %728 = vmatprep.mubr.f32.mxu0 0.0
        %729 = vmatmul.mubr.f32.gmra.mrb[0].mxu0 %v659
        %v730 = vpop.f32.mrb[0].mxu0
        %v731 = vadd.f32 0.0, %v730
        %v732 = vpop.f32.mrb[0].mxu0
        %733 = vdwg.mxu0
        %v734 = vsel %vm646, %v632, 0
        %v737 = vsel %vm646, %v652, 0
        %739 = vmatprep.subr.mxu0 0.0
        %740 = vmatpush1.xpose.msra.mxu0 %v737
        %741 = vmatprep.subr.mxu0 0.0
        %742 = vmatpush1.xpose.msra.mxu0 0.0
        %743 = vmatprep.subr.mxu0 0.0
        %744 = vmatpush1.xpose.msra.mxu0 0.0
        %745 = vmatprep.subr.mxu0 0.0
        %746 = vmatpush1.xpose.msra.mxu0 0.0
        %747 = vmatprep.subr.mxu0 0.0
        %748 = vmatpush1.xpose.msra.mxu0 0.0
        %749 = vmatprep.subr.mxu0 0.0
        %750 = vmatpush1.xpose.msra.mxu0 0.0
        %751 = vmatprep.subr.mxu0 0.0
        %752 = vmatpush1.xpose.msra.mxu0 0.0
        %753 = vmatprep.subr.mxu0 0.0
        %754 = vmatpush1.xpose.msra.mxu0 0.0
        %755 = vmatprep.subr.mxu0 0.0
        %756 = vmatpush1.xpose.msra.mxu0 0.0
        %757 = vmatprep.subr.mxu0 0.0
        %758 = vmatpush1.xpose.msra.mxu0 0.0
        %759 = vmatprep.subr.mxu0 0.0
        %760 = vmatpush1.xpose.msra.mxu0 0.0
        %761 = vmatprep.subr.mxu0 0.0
        %762 = vmatpush1.xpose.msra.mxu0 0.0
        %763 = vmatprep.subr.mxu0 0.0
        %764 = vmatpush1.xpose.msra.mxu0 0.0
        %765 = vmatprep.subr.mxu0 0.0
        %766 = vmatpush1.xpose.msra.mxu0 0.0
        %767 = vmatprep.subr.mxu0 0.0
        %768 = vmatpush1.xpose.msra.mxu0 0.0
        %769 = vmatprep.subr.mxu0 0.0
        %770 = vmatpush1.xpose.msra.mxu0 0.0
        %771 = vmatprep.subr.mxu0 0.0
        %772 = vmatpush1.xpose.msra.mxu0 0.0
        %773 = vmatprep.subr.mxu0 0.0
        %774 = vmatpush1.xpose.msra.mxu0 0.0
        %775 = vmatprep.subr.mxu0 0.0
        %776 = vmatpush1.xpose.msra.mxu0 0.0
        %777 = vmatprep.subr.mxu0 0.0
        %778 = vmatpush1.xpose.msra.mxu0 0.0
        %779 = vmatprep.subr.mxu0 0.0
        %780 = vmatpush1.xpose.msra.mxu0 0.0
        %781 = vmatprep.subr.mxu0 0.0
        %782 = vmatpush1.xpose.msra.mxu0 0.0
        %783 = vmatprep.subr.mxu0 0.0
        %784 = vmatpush1.xpose.msra.mxu0 0.0
        %785 = vmatprep.subr.mxu0 0.0
        %786 = vmatpush1.xpose.msra.mxu0 0.0
        %787 = vmatprep.subr.mxu0 0.0
        %788 = vmatpush1.xpose.msra.mxu0 0.0
        %789 = vmatprep.subr.mxu0 0.0
        %790 = vmatpush1.xpose.msra.mxu0 0.0
        %791 = vmatprep.subr.mxu0 0.0
        %792 = vmatpush1.xpose.msra.mxu0 0.0
        %793 = vmatprep.subr.mxu0 0.0
        %794 = vmatpush1.xpose.msra.mxu0 0.0
        %795 = vmatprep.subr.mxu0 0.0
        %796 = vmatpush1.xpose.msra.mxu0 0.0
        %797 = vmatprep.subr.mxu0 0.0
        %798 = vmatpush1.xpose.msra.mxu0 0.0
        %799 = vmatprep.subr.mxu0 0.0
        %800 = vmatpush1.xpose.msra.mxu0 0.0
        %801 = vmatprep.subr.mxu0 0.0
        %802 = vmatpush1.xpose.msra.mxu0 0.0
        %803 = vmatprep.mubr.f32.mxu0 0.0
        %804 = vmatmul.mubr.f32.gmra.mrb[0].mxu0 %v734
        %v805 = vpop.f32.mrb[0].mxu0
        %v806 = vadd.f32 0.0, %v805
        %v807 = vpop.f32.mrb[0].mxu0
        %808 = vdwg.mxu0
        %v809 = vsel %vm646, %v634, 0
        %v812 = vsel %vm646, %v653, 0
        %814 = vmatprep.subr.mxu0 0.0
        %815 = vmatpush1.xpose.msra.mxu0 %v812
        %816 = vmatprep.subr.mxu0 0.0
        %817 = vmatpush1.xpose.msra.mxu0 0.0
        %818 = vmatprep.subr.mxu0 0.0
        %819 = vmatpush1.xpose.msra.mxu0 0.0
        %820 = vmatprep.subr.mxu0 0.0
        %821 = vmatpush1.xpose.msra.mxu0 0.0
        %822 = vmatprep.subr.mxu0 0.0
        %823 = vmatpush1.xpose.msra.mxu0 0.0
        %824 = vmatprep.subr.mxu0 0.0
        %825 = vmatpush1.xpose.msra.mxu0 0.0
        %826 = vmatprep.subr.mxu0 0.0
        %827 = vmatpush1.xpose.msra.mxu0 0.0
        %828 = vmatprep.subr.mxu0 0.0
        %829 = vmatpush1.xpose.msra.mxu0 0.0
        %830 = vmatprep.subr.mxu0 0.0
        %831 = vmatpush1.xpose.msra.mxu0 0.0
        %832 = vmatprep.subr.mxu0 0.0
        %833 = vmatpush1.xpose.msra.mxu0 0.0
        %834 = vmatprep.subr.mxu0 0.0
        %835 = vmatpush1.xpose.msra.mxu0 0.0
        %836 = vmatprep.subr.mxu0 0.0
        %837 = vmatpush1.xpose.msra.mxu0 0.0
        %838 = vmatprep.subr.mxu0 0.0
        %839 = vmatpush1.xpose.msra.mxu0 0.0
        %840 = vmatprep.subr.mxu0 0.0
        %841 = vmatpush1.xpose.msra.mxu0 0.0
        %842 = vmatprep.subr.mxu0 0.0
        %843 = vmatpush1.xpose.msra.mxu0 0.0
        %844 = vmatprep.subr.mxu0 0.0
        %845 = vmatpush1.xpose.msra.mxu0 0.0
        %846 = vmatprep.subr.mxu0 0.0
        %847 = vmatpush1.xpose.msra.mxu0 0.0
        %848 = vmatprep.subr.mxu0 0.0
        %849 = vmatpush1.xpose.msra.mxu0 0.0
        %850 = vmatprep.subr.mxu0 0.0
        %851 = vmatpush1.xpose.msra.mxu0 0.0
        %852 = vmatprep.subr.mxu0 0.0
        %853 = vmatpush1.xpose.msra.mxu0 0.0
        %854 = vmatprep.subr.mxu0 0.0
        %855 = vmatpush1.xpose.msra.mxu0 0.0
        %856 = vmatprep.subr.mxu0 0.0
        %857 = vmatpush1.xpose.msra.mxu0 0.0
        %858 = vmatprep.subr.mxu0 0.0
        %859 = vmatpush1.xpose.msra.mxu0 0.0
        %860 = vmatprep.subr.mxu0 0.0
        %861 = vmatpush1.xpose.msra.mxu0 0.0
        %862 = vmatprep.subr.mxu0 0.0
        %863 = vmatpush1.xpose.msra.mxu0 0.0
        %864 = vmatprep.subr.mxu0 0.0
        %865 = vmatpush1.xpose.msra.mxu0 0.0
        %866 = vmatprep.subr.mxu0 0.0
        %867 = vmatpush1.xpose.msra.mxu0 0.0
        %868 = vmatprep.subr.mxu0 0.0
        %869 = vmatpush1.xpose.msra.mxu0 0.0
        %870 = vmatprep.subr.mxu0 0.0
        %871 = vmatpush1.xpose.msra.mxu0 0.0
        %872 = vmatprep.subr.mxu0 0.0
        %873 = vmatpush1.xpose.msra.mxu0 0.0
        %874 = vmatprep.subr.mxu0 0.0
        %875 = vmatpush1.xpose.msra.mxu0 0.0
        %876 = vmatprep.subr.mxu0 0.0
        %877 = vmatpush1.xpose.msra.mxu0 0.0
        %878 = vmatprep.mubr.f32.mxu0 0.0
        %879 = vmatmul.mubr.f32.gmra.mrb[0].mxu0 %v809
        %v880 = vpop.f32.mrb[0].mxu0
        %v881 = vadd.f32 0.0, %v880
        %v882 = vpop.f32.mrb[0].mxu0
        %883 = vdwg.mxu0
        %v884 = vsel %vm646, %v636, 0
        %v887 = vsel %vm646, %v654, 0
        %889 = vmatprep.subr.mxu0 0.0
        %890 = vmatpush1.xpose.msra.mxu0 %v887
        %891 = vmatprep.subr.mxu0 0.0
        %892 = vmatpush1.xpose.msra.mxu0 0.0
        %893 = vmatprep.subr.mxu0 0.0
        %894 = vmatpush1.xpose.msra.mxu0 0.0
        %895 = vmatprep.subr.mxu0 0.0
        %896 = vmatpush1.xpose.msra.mxu0 0.0
        %897 = vmatprep.subr.mxu0 0.0
        %898 = vmatpush1.xpose.msra.mxu0 0.0
        %899 = vmatprep.subr.mxu0 0.0
        %900 = vmatpush1.xpose.msra.mxu0 0.0
        %901 = vmatprep.subr.mxu0 0.0
        %902 = vmatpush1.xpose.msra.mxu0 0.0
        %903 = vmatprep.subr.mxu0 0.0
        %904 = vmatpush1.xpose.msra.mxu0 0.0
        %905 = vmatprep.subr.mxu0 0.0
        %906 = vmatpush1.xpose.msra.mxu0 0.0
        %907 = vmatprep.subr.mxu0 0.0
        %908 = vmatpush1.xpose.msra.mxu0 0.0
        %909 = vmatprep.subr.mxu0 0.0
        %910 = vmatpush1.xpose.msra.mxu0 0.0
        %911 = vmatprep.subr.mxu0 0.0
        %912 = vmatpush1.xpose.msra.mxu0 0.0
        %913 = vmatprep.subr.mxu0 0.0
        %914 = vmatpush1.xpose.msra.mxu0 0.0
        %915 = vmatprep.subr.mxu0 0.0
        %916 = vmatpush1.xpose.msra.mxu0 0.0
        %917 = vmatprep.subr.mxu0 0.0
        %918 = vmatpush1.xpose.msra.mxu0 0.0
        %919 = vmatprep.subr.mxu0 0.0
        %920 = vmatpush1.xpose.msra.mxu0 0.0
        %921 = vmatprep.subr.mxu0 0.0
        %922 = vmatpush1.xpose.msra.mxu0 0.0
        %923 = vmatprep.subr.mxu0 0.0
        %924 = vmatpush1.xpose.msra.mxu0 0.0
        %925 = vmatprep.subr.mxu0 0.0
        %926 = vmatpush1.xpose.msra.mxu0 0.0
        %927 = vmatprep.subr.mxu0 0.0
        %928 = vmatpush1.xpose.msra.mxu0 0.0
        %929 = vmatprep.subr.mxu0 0.0
        %930 = vmatpush1.xpose.msra.mxu0 0.0
        %931 = vmatprep.subr.mxu0 0.0
        %932 = vmatpush1.xpose.msra.mxu0 0.0
        %933 = vmatprep.subr.mxu0 0.0
        %934 = vmatpush1.xpose.msra.mxu0 0.0
        %935 = vmatprep.subr.mxu0 0.0
        %936 = vmatpush1.xpose.msra.mxu0 0.0
        %937 = vmatprep.subr.mxu0 0.0
        %938 = vmatpush1.xpose.msra.mxu0 0.0
        %939 = vmatprep.subr.mxu0 0.0
        %940 = vmatpush1.xpose.msra.mxu0 0.0
        %941 = vmatprep.subr.mxu0 0.0
        %942 = vmatpush1.xpose.msra.mxu0 0.0
        %943 = vmatprep.subr.mxu0 0.0
        %944 = vmatpush1.xpose.msra.mxu0 0.0
        %945 = vmatprep.subr.mxu0 0.0
        %946 = vmatpush1.xpose.msra.mxu0 0.0
        %947 = vmatprep.subr.mxu0 0.0
        %948 = vmatpush1.xpose.msra.mxu0 0.0
        %949 = vmatprep.subr.mxu0 0.0
        %950 = vmatpush1.xpose.msra.mxu0 0.0
        %951 = vmatprep.subr.mxu0 0.0
        %952 = vmatpush1.xpose.msra.mxu0 0.0
        %953 = vmatprep.mubr.f32.mxu0 0.0
        %954 = vmatmul.mubr.f32.gmra.mrb[0].mxu0 %v884
        %v955 = vpop.f32.mrb[0].mxu0
        %v956 = vadd.f32 0.0, %v955
        %v957 = vpop.f32.mrb[0].mxu0
        %958 = vdwg.mxu0
        %v959 = vld [vmem:[#allocation4] sm:$0xff]
        %v960 = vld [vmem:[#allocation4 + $0x8] sm:$0xff]
        %v961 = vld [vmem:[#allocation4 + $0x10] sm:$0xff]
        %v962 = vld [vmem:[#allocation4 + $0x18] sm:$0xff]
        %v963 = vsel %vm646, %v731, -inf
        %964 = vmax.xlane.f32.xlu0 %v963
        %v965 = vpop.xlane.xlu0 %964
        %v966 = vsel %vm646, %v806, -inf
        %967 = vmax.xlane.f32.xlu0 %v966
        %v968 = vpop.xlane.xlu0 %967
        %v969 = vsel %vm646, %v881, -inf
        %970 = vmax.xlane.f32.xlu0 %v969
        %v971 = vpop.xlane.xlu0 %970
        %v972 = vsel %vm646, %v956, -inf
        %973 = vmax.xlane.f32.xlu0 %v972
        %v974 = vpop.xlane.xlu0 %973
        %v975 = vmax.f32 %v959, %v965
        %v976 = vmax.f32 %v960, %v968
        %v977 = vmax.f32 %v961, %v971
        %v978 = vmax.f32 %v962, %v974
        %v979 = vsub.f32 %v959, %v975
        %v980 = vsub.f32 %v960, %v976
        %v981 = vsub.f32 %v961, %v977
        %v982 = vsub.f32 %v962, %v978
        %v983 = vmul.f32 %v979, 1.442695
        %v984 = vpow.pop %v983
        %v985 = vmul.f32 %v980, 1.442695
        %v986 = vpow.pop %v985
        %v987 = vmul.f32 %v981, 1.442695
        %v988 = vpow.pop %v987
        %v989 = vmul.f32 %v982, 1.442695
        %v990 = vpow.pop %v989
        %992 = vset.pattern.permute.xlu0 0
        %993 = vperm.xlu0 %992, %v975
        %v994 = vpop.permute.xlu0 %993
        %997 = vset.pattern.permute.xlu0 0
        %998 = vperm.xlu0 %997, %v976
        %v999 = vpop.permute.xlu0 %998
        %1002 = vset.pattern.permute.xlu0 0
        %1003 = vperm.xlu0 %1002, %v977
        %v1004 = vpop.permute.xlu0 %1003
        %1007 = vset.pattern.permute.xlu0 0
        %1008 = vperm.xlu0 %1007, %v978
        %v1009 = vpop.permute.xlu0 %1008
        %v1011 = vsub.f32 %v731, %v994
        %v1012 = vsub.f32 %v806, %v999
        %v1013 = vsub.f32 %v881, %v1004
        %v1014 = vsub.f32 %v956, %v1009
        %v1015 = vmul.f32 %v1011, 1.442695
        %v1016 = vpow.pop %v1015
        %v1017 = vmul.f32 %v1012, 1.442695
        %v1018 = vpow.pop %v1017
        %v1019 = vmul.f32 %v1013, 1.442695
        %v1020 = vpow.pop %v1019
        %v1021 = vmul.f32 %v1014, 1.442695
        %v1022 = vpow.pop %v1021
        %v1023 = vld [vmem:[#allocation5] sm:$0xff]
        %v1024 = vld [vmem:[#allocation5 + $0x8] sm:$0xff]
        %v1025 = vld [vmem:[#allocation5 + $0x10] sm:$0xff]
        %v1026 = vld [vmem:[#allocation5 + $0x18] sm:$0xff]
        %v1027 = vmul.f32 %v984, %v1023
        %v1028 = vmul.f32 %v986, %v1024
        %v1029 = vmul.f32 %v988, %v1025
        %v1030 = vmul.f32 %v990, %v1026
        %v1031 = vsel %vm646, %v1016, 0.0
        %1032 = vadd.xlane.f32.xlu0 %v1031
        %v1033 = vpop.xlane.xlu0 %1032
        %v1034 = vsel %vm646, %v1018, 0.0
        %1035 = vadd.xlane.f32.xlu0 %v1034
        %v1036 = vpop.xlane.xlu0 %1035
        %v1037 = vsel %vm646, %v1020, 0.0
        %1038 = vadd.xlane.f32.xlu0 %v1037
        %v1039 = vpop.xlane.xlu0 %1038
        %v1040 = vsel %vm646, %v1022, 0.0
        %1041 = vadd.xlane.f32.xlu0 %v1040
        %v1042 = vpop.xlane.xlu0 %1041
        %v1043 = vadd.f32 %v1027, %v1033
        %v1044 = vadd.f32 %v1028, %v1036
        %v1045 = vadd.f32 %v1029, %v1039
        %v1046 = vadd.f32 %v1030, %v1042
        %1047 = vst.msk [vmem:[#allocation5] sm:$0xff] %vm637, %v1043
        %1048 = vst.msk [vmem:[#allocation5 + $0x8] sm:$0xff] %vm637, %v1044
        %1049 = vst.msk [vmem:[#allocation5 + $0x10] sm:$0xff] %vm637, %v1045
        %1050 = vst.msk [vmem:[#allocation5 + $0x18] sm:$0xff] %vm637, %v1046
        %v1051 = vld [vmem:[#allocation6] sm:$0xff]
        %v1052 = vld [vmem:[#allocation6 + $0x8] sm:$0xff]
        %v1053 = vld [vmem:[#allocation6 + $0x10] sm:$0xff]
        %v1054 = vld [vmem:[#allocation6 + $0x18] sm:$0xff]
        %1056 = vset.pattern.permute.xlu0 0
        %1057 = vperm.xlu0 %1056, %v984
        %v1058 = vpop.permute.xlu0 %1057
        %1061 = vset.pattern.permute.xlu0 0
        %1062 = vperm.xlu0 %1061, %v986
        %v1063 = vpop.permute.xlu0 %1062
        %1066 = vset.pattern.permute.xlu0 0
        %1067 = vperm.xlu0 %1066, %v988
        %v1068 = vpop.permute.xlu0 %1067
        %1071 = vset.pattern.permute.xlu0 0
        %1072 = vperm.xlu0 %1071, %v990
        %v1073 = vpop.permute.xlu0 %1072
        %v1075 = vmul.f32 %v1058, %v1051
        %v1076 = vmul.f32 %v1063, %v1052
        %v1077 = vmul.f32 %v1068, %v1053
        %v1078 = vmul.f32 %v1073, %v1054
        %v1080 = vsel %vm646, %v1016, 0
        %1082 = vmatprep.subr.mxu0 0.0
        %1083 = vmatpush1.msra.mxu0 %v655
        %1084 = vmatprep.subr.mxu0 0.0
        %1085 = vmatpush1.msra.mxu0 0.0
        %1086 = vmatprep.subr.mxu0 0.0
        %1087 = vmatpush1.msra.mxu0 0.0
        %1088 = vmatprep.subr.mxu0 0.0
        %1089 = vmatpush1.msra.mxu0 0.0
        %1090 = vmatprep.subr.mxu0 0.0
        %1091 = vmatpush1.msra.mxu0 0.0
        %1092 = vmatprep.subr.mxu0 0.0
        %1093 = vmatpush1.msra.mxu0 0.0
        %1094 = vmatprep.subr.mxu0 0.0
        %1095 = vmatpush1.msra.mxu0 0.0
        %1096 = vmatprep.subr.mxu0 0.0
        %1097 = vmatpush1.msra.mxu0 0.0
        %1098 = vmatprep.subr.mxu0 0.0
        %1099 = vmatpush1.msra.mxu0 0.0
        %1100 = vmatprep.subr.mxu0 0.0
        %1101 = vmatpush1.msra.mxu0 0.0
        %1102 = vmatprep.subr.mxu0 0.0
        %1103 = vmatpush1.msra.mxu0 0.0
        %1104 = vmatprep.subr.mxu0 0.0
        %1105 = vmatpush1.msra.mxu0 0.0
        %1106 = vmatprep.subr.mxu0 0.0
        %1107 = vmatpush1.msra.mxu0 0.0
        %1108 = vmatprep.subr.mxu0 0.0
        %1109 = vmatpush1.msra.mxu0 0.0
        %1110 = vmatprep.subr.mxu0 0.0
        %1111 = vmatpush1.msra.mxu0 0.0
        %1112 = vmatprep.subr.mxu0 0.0
        %1113 = vmatpush1.msra.mxu0 0.0
        %1114 = vmatprep.subr.mxu0 0.0
        %1115 = vmatpush1.msra.mxu0 0.0
        %1116 = vmatprep.subr.mxu0 0.0
        %1117 = vmatpush1.msra.mxu0 0.0
        %1118 = vmatprep.subr.mxu0 0.0
        %1119 = vmatpush1.msra.mxu0 0.0
        %1120 = vmatprep.subr.mxu0 0.0
        %1121 = vmatpush1.msra.mxu0 0.0
        %1122 = vmatprep.subr.mxu0 0.0
        %1123 = vmatpush1.msra.mxu0 0.0
        %1124 = vmatprep.subr.mxu0 0.0
        %1125 = vmatpush1.msra.mxu0 0.0
        %1126 = vmatprep.subr.mxu0 0.0
        %1127 = vmatpush1.msra.mxu0 0.0
        %1128 = vmatprep.subr.mxu0 0.0
        %1129 = vmatpush1.msra.mxu0 0.0
        %1130 = vmatprep.subr.mxu0 0.0
        %1131 = vmatpush1.msra.mxu0 0.0
        %1132 = vmatprep.subr.mxu0 0.0
        %1133 = vmatpush1.msra.mxu0 0.0
        %1134 = vmatprep.subr.mxu0 0.0
        %1135 = vmatpush1.msra.mxu0 0.0
        %1136 = vmatprep.subr.mxu0 0.0
        %1137 = vmatpush1.msra.mxu0 0.0
        %1138 = vmatprep.subr.mxu0 0.0
        %1139 = vmatpush1.msra.mxu0 0.0
        %1140 = vmatprep.subr.mxu0 0.0
        %1141 = vmatpush1.msra.mxu0 0.0
        %1142 = vmatprep.subr.mxu0 0.0
        %1143 = vmatpush1.msra.mxu0 0.0
        %1144 = vmatprep.subr.mxu0 0.0
        %1145 = vmatpush1.msra.mxu0 0.0
        %1146 = vmatprep.mubr.f32.mxu0 0.0
        %1147 = vmatmul.mubr.f32.gmra.mrb[0].mxu0 %v1080
        %v1148 = vpop.f32.mrb[0].mxu0
        %v1149 = vadd.f32 0.0, %v1148
        %v1150 = vpop.f32.mrb[0].mxu0
        %1151 = vdwg.mxu0
        %v1153 = vsel %vm646, %v1018, 0
        %1155 = vmatprep.subr.mxu0 0.0
        %1156 = vmatpush1.msra.mxu0 %v656
        %1157 = vmatprep.subr.mxu0 0.0
        %1158 = vmatpush1.msra.mxu0 0.0
        %1159 = vmatprep.subr.mxu0 0.0
        %1160 = vmatpush1.msra.mxu0 0.0
        %1161 = vmatprep.subr.mxu0 0.0
        %1162 = vmatpush1.msra.mxu0 0.0
        %1163 = vmatprep.subr.mxu0 0.0
        %1164 = vmatpush1.msra.mxu0 0.0
        %1165 = vmatprep.subr.mxu0 0.0
        %1166 = vmatpush1.msra.mxu0 0.0
        %1167 = vmatprep.subr.mxu0 0.0
        %1168 = vmatpush1.msra.mxu0 0.0
        %1169 = vmatprep.subr.mxu0 0.0
        %1170 = vmatpush1.msra.mxu0 0.0
        %1171 = vmatprep.subr.mxu0 0.0
        %1172 = vmatpush1.msra.mxu0 0.0
        %1173 = vmatprep.subr.mxu0 0.0
        %1174 = vmatpush1.msra.mxu0 0.0
        %1175 = vmatprep.subr.mxu0 0.0
        %1176 = vmatpush1.msra.mxu0 0.0
        %1177 = vmatprep.subr.mxu0 0.0
        %1178 = vmatpush1.msra.mxu0 0.0
        %1179 = vmatprep.subr.mxu0 0.0
        %1180 = vmatpush1.msra.mxu0 0.0
        %1181 = vmatprep.subr.mxu0 0.0
        %1182 = vmatpush1.msra.mxu0 0.0
        %1183 = vmatprep.subr.mxu0 0.0
        %1184 = vmatpush1.msra.mxu0 0.0
        %1185 = vmatprep.subr.mxu0 0.0
        %1186 = vmatpush1.msra.mxu0 0.0
        %1187 = vmatprep.subr.mxu0 0.0
        %1188 = vmatpush1.msra.mxu0 0.0
        %1189 = vmatprep.subr.mxu0 0.0
        %1190 = vmatpush1.msra.mxu0 0.0
        %1191 = vmatprep.subr.mxu0 0.0
        %1192 = vmatpush1.msra.mxu0 0.0
        %1193 = vmatprep.subr.mxu0 0.0
        %1194 = vmatpush1.msra.mxu0 0.0
        %1195 = vmatprep.subr.mxu0 0.0
        %1196 = vmatpush1.msra.mxu0 0.0
        %1197 = vmatprep.subr.mxu0 0.0
        %1198 = vmatpush1.msra.mxu0 0.0
        %1199 = vmatprep.subr.mxu0 0.0
        %1200 = vmatpush1.msra.mxu0 0.0
        %1201 = vmatprep.subr.mxu0 0.0
        %1202 = vmatpush1.msra.mxu0 0.0
        %1203 = vmatprep.subr.mxu0 0.0
        %1204 = vmatpush1.msra.mxu0 0.0
        %1205 = vmatprep.subr.mxu0 0.0
        %1206 = vmatpush1.msra.mxu0 0.0
        %1207 = vmatprep.subr.mxu0 0.0
        %1208 = vmatpush1.msra.mxu0 0.0
        %1209 = vmatprep.subr.mxu0 0.0
        %1210 = vmatpush1.msra.mxu0 0.0
        %1211 = vmatprep.subr.mxu0 0.0
        %1212 = vmatpush1.msra.mxu0 0.0
        %1213 = vmatprep.subr.mxu0 0.0
        %1214 = vmatpush1.msra.mxu0 0.0
        %1215 = vmatprep.subr.mxu0 0.0
        %1216 = vmatpush1.msra.mxu0 0.0
        %1217 = vmatprep.subr.mxu0 0.0
        %1218 = vmatpush1.msra.mxu0 0.0
        %1219 = vmatprep.mubr.f32.mxu0 0.0
        %1220 = vmatmul.mubr.f32.gmra.mrb[0].mxu0 %v1153
        %v1221 = vpop.f32.mrb[0].mxu0
        %v1222 = vadd.f32 0.0, %v1221
        %v1223 = vpop.f32.mrb[0].mxu0
        %1224 = vdwg.mxu0
        %v1226 = vsel %vm646, %v1020, 0
        %1228 = vmatprep.subr.mxu0 0.0
        %1229 = vmatpush1.msra.mxu0 %v657
        %1230 = vmatprep.subr.mxu0 0.0
        %1231 = vmatpush1.msra.mxu0 0.0
        %1232 = vmatprep.subr.mxu0 0.0
        %1233 = vmatpush1.msra.mxu0 0.0
        %1234 = vmatprep.subr.mxu0 0.0
        %1235 = vmatpush1.msra.mxu0 0.0
        %1236 = vmatprep.subr.mxu0 0.0
        %1237 = vmatpush1.msra.mxu0 0.0
        %1238 = vmatprep.subr.mxu0 0.0
        %1239 = vmatpush1.msra.mxu0 0.0
        %1240 = vmatprep.subr.mxu0 0.0
        %1241 = vmatpush1.msra.mxu0 0.0
        %1242 = vmatprep.subr.mxu0 0.0
        %1243 = vmatpush1.msra.mxu0 0.0
        %1244 = vmatprep.subr.mxu0 0.0
        %1245 = vmatpush1.msra.mxu0 0.0
        %1246 = vmatprep.subr.mxu0 0.0
        %1247 = vmatpush1.msra.mxu0 0.0
        %1248 = vmatprep.subr.mxu0 0.0
        %1249 = vmatpush1.msra.mxu0 0.0
        %1250 = vmatprep.subr.mxu0 0.0
        %1251 = vmatpush1.msra.mxu0 0.0
        %1252 = vmatprep.subr.mxu0 0.0
        %1253 = vmatpush1.msra.mxu0 0.0
        %1254 = vmatprep.subr.mxu0 0.0
        %1255 = vmatpush1.msra.mxu0 0.0
        %1256 = vmatprep.subr.mxu0 0.0
        %1257 = vmatpush1.msra.mxu0 0.0
        %1258 = vmatprep.subr.mxu0 0.0
        %1259 = vmatpush1.msra.mxu0 0.0
        %1260 = vmatprep.subr.mxu0 0.0
        %1261 = vmatpush1.msra.mxu0 0.0
        %1262 = vmatprep.subr.mxu0 0.0
        %1263 = vmatpush1.msra.mxu0 0.0
        %1264 = vmatprep.subr.mxu0 0.0
        %1265 = vmatpush1.msra.mxu0 0.0
        %1266 = vmatprep.subr.mxu0 0.0
        %1267 = vmatpush1.msra.mxu0 0.0
        %1268 = vmatprep.subr.mxu0 0.0
        %1269 = vmatpush1.msra.mxu0 0.0
        %1270 = vmatprep.subr.mxu0 0.0
        %1271 = vmatpush1.msra.mxu0 0.0
        %1272 = vmatprep.subr.mxu0 0.0
        %1273 = vmatpush1.msra.mxu0 0.0
        %1274 = vmatprep.subr.mxu0 0.0
        %1275 = vmatpush1.msra.mxu0 0.0
        %1276 = vmatprep.subr.mxu0 0.0
        %1277 = vmatpush1.msra.mxu0 0.0
        %1278 = vmatprep.subr.mxu0 0.0
        %1279 = vmatpush1.msra.mxu0 0.0
        %1280 = vmatprep.subr.mxu0 0.0
        %1281 = vmatpush1.msra.mxu0 0.0
        %1282 = vmatprep.subr.mxu0 0.0
        %1283 = vmatpush1.msra.mxu0 0.0
        %1284 = vmatprep.subr.mxu0 0.0
        %1285 = vmatpush1.msra.mxu0 0.0
        %1286 = vmatprep.subr.mxu0 0.0
        %1287 = vmatpush1.msra.mxu0 0.0
        %1288 = vmatprep.subr.mxu0 0.0
        %1289 = vmatpush1.msra.mxu0 0.0
        %1290 = vmatprep.subr.mxu0 0.0
        %1291 = vmatpush1.msra.mxu0 0.0
        %1292 = vmatprep.mubr.f32.mxu0 0.0
        %1293 = vmatmul.mubr.f32.gmra.mrb[0].mxu0 %v1226
        %v1294 = vpop.f32.mrb[0].mxu0
        %v1295 = vadd.f32 0.0, %v1294
        %v1296 = vpop.f32.mrb[0].mxu0
        %1297 = vdwg.mxu0
        %v1299 = vsel %vm646, %v1022, 0
        %1301 = vmatprep.subr.mxu0 0.0
        %1302 = vmatpush1.msra.mxu0 %v658
        %1303 = vmatprep.subr.mxu0 0.0
        %1304 = vmatpush1.msra.mxu0 0.0
        %1305 = vmatprep.subr.mxu0 0.0
        %1306 = vmatpush1.msra.mxu0 0.0
        %1307 = vmatprep.subr.mxu0 0.0
        %1308 = vmatpush1.msra.mxu0 0.0
        %1309 = vmatprep.subr.mxu0 0.0
        %1310 = vmatpush1.msra.mxu0 0.0
        %1311 = vmatprep.subr.mxu0 0.0
        %1312 = vmatpush1.msra.mxu0 0.0
        %1313 = vmatprep.subr.mxu0 0.0
        %1314 = vmatpush1.msra.mxu0 0.0
        %1315 = vmatprep.subr.mxu0 0.0
        %1316 = vmatpush1.msra.mxu0 0.0
        %1317 = vmatprep.subr.mxu0 0.0
        %1318 = vmatpush1.msra.mxu0 0.0
        %1319 = vmatprep.subr.mxu0 0.0
        %1320 = vmatpush1.msra.mxu0 0.0
        %1321 = vmatprep.subr.mxu0 0.0
        %1322 = vmatpush1.msra.mxu0 0.0
        %1323 = vmatprep.subr.mxu0 0.0
        %1324 = vmatpush1.msra.mxu0 0.0
        %1325 = vmatprep.subr.mxu0 0.0
        %1326 = vmatpush1.msra.mxu0 0.0
        %1327 = vmatprep.subr.mxu0 0.0
        %1328 = vmatpush1.msra.mxu0 0.0
        %1329 = vmatprep.subr.mxu0 0.0
        %1330 = vmatpush1.msra.mxu0 0.0
        %1331 = vmatprep.subr.mxu0 0.0
        %1332 = vmatpush1.msra.mxu0 0.0
        %1333 = vmatprep.subr.mxu0 0.0
        %1334 = vmatpush1.msra.mxu0 0.0
        %1335 = vmatprep.subr.mxu0 0.0
        %1336 = vmatpush1.msra.mxu0 0.0
        %1337 = vmatprep.subr.mxu0 0.0
        %1338 = vmatpush1.msra.mxu0 0.0
        %1339 = vmatprep.subr.mxu0 0.0
        %1340 = vmatpush1.msra.mxu0 0.0
        %1341 = vmatprep.subr.mxu0 0.0
        %1342 = vmatpush1.msra.mxu0 0.0
        %1343 = vmatprep.subr.mxu0 0.0
        %1344 = vmatpush1.msra.mxu0 0.0
        %1345 = vmatprep.subr.mxu0 0.0
        %1346 = vmatpush1.msra.mxu0 0.0
        %1347 = vmatprep.subr.mxu0 0.0
        %1348 = vmatpush1.msra.mxu0 0.0
        %1349 = vmatprep.subr.mxu0 0.0
        %1350 = vmatpush1.msra.mxu0 0.0
        %1351 = vmatprep.subr.mxu0 0.0
        %1352 = vmatpush1.msra.mxu0 0.0
        %1353 = vmatprep.subr.mxu0 0.0
        %1354 = vmatpush1.msra.mxu0 0.0
        %1355 = vmatprep.subr.mxu0 0.0
        %1356 = vmatpush1.msra.mxu0 0.0
        %1357 = vmatprep.subr.mxu0 0.0
        %1358 = vmatpush1.msra.mxu0 0.0
        %1359 = vmatprep.subr.mxu0 0.0
        %1360 = vmatpush1.msra.mxu0 0.0
        %1361 = vmatprep.subr.mxu0 0.0
        %1362 = vmatpush1.msra.mxu0 0.0
        %1363 = vmatprep.subr.mxu0 0.0
        %1364 = vmatpush1.msra.mxu0 0.0
        %1365 = vmatprep.mubr.f32.mxu0 0.0
        %1366 = vmatmul.mubr.f32.gmra.mrb[0].mxu0 %v1299
        %v1367 = vpop.f32.mrb[0].mxu0
        %v1368 = vadd.f32 0.0, %v1367
        %v1369 = vpop.f32.mrb[0].mxu0
        %1370 = vdwg.mxu0
        %v1371 = vadd.f32 %v1075, %v1149
        %v1372 = vadd.f32 %v1076, %v1222
        %v1373 = vadd.f32 %v1077, %v1295
        %v1374 = vadd.f32 %v1078, %v1368
        %1375 = vst.msk [vmem:[#allocation6] sm:$0xff] %vm646, %v1371
        %1376 = vst.msk [vmem:[#allocation6 + $0x8] sm:$0xff] %vm646, %v1372
        %1377 = vst.msk [vmem:[#allocation6 + $0x10] sm:$0xff] %vm646, %v1373
        %1378 = vst.msk [vmem:[#allocation6 + $0x18] sm:$0xff] %vm646, %v1374
        %1379 = vst.msk [vmem:[#allocation4] sm:$0xff] %vm637, %v975
        %1380 = vst.msk [vmem:[#allocation4 + $0x8] sm:$0xff] %vm637, %v976
        %1381 = vst.msk [vmem:[#allocation4 + $0x10] sm:$0xff] %vm637, %v977
        %1382 = vst.msk [vmem:[#allocation4 + $0x18] sm:$0xff] %vm637, %v978
        %v1383 = vld [vmem:[#allocation5] sm:$0xff]
        %v1384 = vld [vmem:[#allocation5 + $0x8] sm:$0xff]
        %v1385 = vld [vmem:[#allocation5 + $0x10] sm:$0xff]
        %v1386 = vld [vmem:[#allocation5 + $0x18] sm:$0xff]
        %v1387 = vrcp.pop %v1383
        %v1388 = vrcp.pop %v1384
        %v1389 = vrcp.pop %v1385
        %v1390 = vrcp.pop %v1386
        %v1391 = vld [vmem:[#allocation6] sm:$0xff]
        %v1392 = vld [vmem:[#allocation6 + $0x8] sm:$0xff]
        %v1393 = vld [vmem:[#allocation6 + $0x10] sm:$0xff]
        %v1394 = vld [vmem:[#allocation6 + $0x18] sm:$0xff]
        %1396 = vset.pattern.permute.xlu0 0
        %1397 = vperm.xlu0 %1396, %v1387
        %v1398 = vpop.permute.xlu0 %1397
        %1401 = vset.pattern.permute.xlu0 0
        %1402 = vperm.xlu0 %1401, %v1388
        %v1403 = vpop.permute.xlu0 %1402
        %1406 = vset.pattern.permute.xlu0 0
        %1407 = vperm.xlu0 %1406, %v1389
        %v1408 = vpop.permute.xlu0 %1407
        %1411 = vset.pattern.permute.xlu0 0
        %1412 = vperm.xlu0 %1411, %v1390
        %v1413 = vpop.permute.xlu0 %1412
        %v1415 = vmul.f32 %v1391, %v1398
        %v1416 = vmul.f32 %v1392, %v1403
        %v1417 = vmul.f32 %v1393, %v1408
        %v1418 = vmul.f32 %v1394, %v1413
        %1420 = vrot.lane.b32.xlu0 %v1416, 8
        %v1421 = vpop.permute.xlu0 %1420
        %1424 = vrot.lane.b32.xlu0 %v1417, 16
        %v1425 = vpop.permute.xlu0 %1424
        %1428 = vrot.lane.b32.xlu0 %v1418, 24
        %v1429 = vpop.permute.xlu0 %1428
        %v1431 = vsel %vm646, %v1415, %v1421
        %vm1432 = vcmask 130048
        %v1433 = vsel %vm1432, %v1431, %v1425
        %vm1434 = vcmask 195584
        %v1435 = vsel %vm1434, %v1433, %v1429
        %v1436 = vld [vmem:[%s7] sm:$0xff]
        %v1437 = vld [vmem:[%s7 + $0x8] sm:$0xff]
        %v1438 = vld [vmem:[%s7 + $0x10] sm:$0xff]
        %v1439 = vld [vmem:[%s7 + $0x18] sm:$0xff]
        %v1440 = vld [vmem:[%s8] sm:$0x1]
        %v1442 = vlaneseq
        %v1443 = vshrl.u32 %v1442, 7
        %v1444 = vsub.s32 0, %v1443
        %v1445 = vrot.slane %v1440, %v1444
        %v1448 = vsel %vm556, %v1435, 0
        %1450 = vmatprep.subr.mxu0 0.0
        %1451 = vmatpush1.msra.mxu0 %v1436
        %1452 = vmatprep.subr.mxu0 0.0
        %1453 = vmatpush1.msra.mxu0 %v1437
        %1454 = vmatprep.subr.mxu0 0.0
        %1455 = vmatpush1.msra.mxu0 %v1438
        %1456 = vmatprep.subr.mxu0 0.0
        %1457 = vmatpush1.msra.mxu0 %v1439
        %1458 = vmatprep.subr.mxu0 0.0
        %1459 = vmatpush1.msra.mxu0 0.0
        %1460 = vmatprep.subr.mxu0 0.0
        %1461 = vmatpush1.msra.mxu0 0.0
        %1462 = vmatprep.subr.mxu0 0.0
        %1463 = vmatpush1.msra.mxu0 0.0
        %1464 = vmatprep.subr.mxu0 0.0
        %1465 = vmatpush1.msra.mxu0 0.0
        %1466 = vmatprep.subr.mxu0 0.0
        %1467 = vmatpush1.msra.mxu0 0.0
        %1468 = vmatprep.subr.mxu0 0.0
        %1469 = vmatpush1.msra.mxu0 0.0
        %1470 = vmatprep.subr.mxu0 0.0
        %1471 = vmatpush1.msra.mxu0 0.0
        %1472 = vmatprep.subr.mxu0 0.0
        %1473 = vmatpush1.msra.mxu0 0.0
        %1474 = vmatprep.subr.mxu0 0.0
        %1475 = vmatpush1.msra.mxu0 0.0
        %1476 = vmatprep.subr.mxu0 0.0
        %1477 = vmatpush1.msra.mxu0 0.0
        %1478 = vmatprep.subr.mxu0 0.0
        %1479 = vmatpush1.msra.mxu0 0.0
        %1480 = vmatprep.subr.mxu0 0.0
        %1481 = vmatpush1.msra.mxu0 0.0
        %1482 = vmatprep.subr.mxu0 0.0
        %1483 = vmatpush1.msra.mxu0 0.0
        %1484 = vmatprep.subr.mxu0 0.0
        %1485 = vmatpush1.msra.mxu0 0.0
        %1486 = vmatprep.subr.mxu0 0.0
        %1487 = vmatpush1.msra.mxu0 0.0
        %1488 = vmatprep.subr.mxu0 0.0
        %1489 = vmatpush1.msra.mxu0 0.0
        %1490 = vmatprep.subr.mxu0 0.0
        %1491 = vmatpush1.msra.mxu0 0.0
        %1492 = vmatprep.subr.mxu0 0.0
        %1493 = vmatpush1.msra.mxu0 0.0
        %1494 = vmatprep.subr.mxu0 0.0
        %1495 = vmatpush1.msra.mxu0 0.0
        %1496 = vmatprep.subr.mxu0 0.0
        %1497 = vmatpush1.msra.mxu0 0.0
        %1498 = vmatprep.subr.mxu0 0.0
        %1499 = vmatpush1.msra.mxu0 0.0
        %1500 = vmatprep.subr.mxu0 0.0
        %1501 = vmatpush1.msra.mxu0 0.0
        %1502 = vmatprep.subr.mxu0 0.0
        %1503 = vmatpush1.msra.mxu0 0.0
        %1504 = vmatprep.subr.mxu0 0.0
        %1505 = vmatpush1.msra.mxu0 0.0
        %1506 = vmatprep.subr.mxu0 0.0
        %1507 = vmatpush1.msra.mxu0 0.0
        %1508 = vmatprep.subr.mxu0 0.0
        %1509 = vmatpush1.msra.mxu0 0.0
        %1510 = vmatprep.subr.mxu0 0.0
        %1511 = vmatpush1.msra.mxu0 0.0
        %1512 = vmatprep.subr.mxu0 0.0
        %1513 = vmatpush1.msra.mxu0 0.0
        %1514 = vmatprep.mubr.f32.mxu0 0.0
        %1515 = vmatmul.mubr.f32.gmra.mrb[0].mxu0 %v1448
        %v1516 = vpop.f32.mrb[0].mxu0
        %v1517 = vadd.f32 %v1445, %v1516
        %v1518 = vpop.f32.mrb[0].mxu0
        %1519 = vdwg.mxu0
        %1520 = vst.msk [vmem:[%s337] sm:$0xff] %vm556, %v1517
        %s1521 = sand.u32 %s239, 1
        %s1522 = scalar_lea.sflag [#allocation8], %s1521
        %s1523 = sand.u32 %s239, 1
        %s1524 = smul.addr %s1523, 8
        %s1525 = scalar_lea.vmem [#allocation7], %s1524
        // Predicated region
        $region61: #{self_attention_gpt2.1} parent=55 // pred_check
          %p1526 = pneg %p249
        $region62: #{self_attention_gpt2.1} parent=55 // pred_check_branch
          %1528 = sbr.rel (%p1526) target = $region64
        $region63: #{self_attention_gpt2.1} parent=55 // pred_region
          %s1530 = ssub.s32 128, 128
          %1531 = vsyncadd %s1522, %s1530
          %s1532 = sadd.s32 %s28, %s27
          %s1533 = smul.addr %s1532, 128
          %s1534 = scalar_lea.hbm %s9, %s1533
          %s1536 = sshll.u32 %s1525, 4
          %s1537 = int_to_ptr.vmem [resolvable:$true] %s1536
          %1539 = dma.vmem_to_hbm [thread:$0]  %s1537, 128, %s1534, %s1522
        $region64: #{self_attention_gpt2.1} parent=55 // pred_fallthru
          _
      $region56: #{self_attention_gpt2.1} parent=5 // pred_fallthru
        _
      %p1540 = scmp.le.s32.totalorder 2, %s18
      // Predicated region
      $region65: #{self_attention_gpt2.1} parent=5 // pred_check
        %p1541 = pneg %p1540
      $region66: #{self_attention_gpt2.1} parent=5 // pred_check_branch
        %1543 = sbr.rel (%p1541) target = $region68
      $region67: #{self_attention_gpt2.1} parent=5 // pred_region
        %s1544 = ssub.s32 %s18, 2
        // Predicated region
        $region69: #{self_attention_gpt2.1} parent=67 // pred_check
          %p1545 = pneg %p255
        $region70: #{self_attention_gpt2.1} parent=67 // pred_check_branch
          %1547 = sbr.rel (%p1545) target = $region72
        $region71: #{self_attention_gpt2.1} parent=67 // pred_region
          %s1548 = sand.u32 %s240, 1
          %s1549 = scalar_lea.sflag [#allocation8], %s1548
          %s1550 = sand.u32 %s240, 1
          %s1551 = smul.addr %s1550, 8
          %s1552 = scalar_lea.vmem [#allocation7], %s1551
          %1553 = dma.done %s1549, 128
        $region72: #{self_attention_gpt2.1} parent=67 // pred_fallthru
          _
      $region68: #{self_attention_gpt2.1} parent=5 // pred_fallthru
        _
    $region6: #{self_attention_gpt2.1} parent=1 // loop_footer
      %s22 = sadd.s32 1, %s18
    $region7: #{self_attention_gpt2.1} parent=1 // loop_footer_branch
      %17 = sbr.rel target = $region3
    $region8: #{self_attention_gpt2.1} parent=1 // loop_exit
      _
    %1554 = vsyncpa [#allocation8], 1
    %s1555 = scalar_lea.sflag [#allocation8], 1
    %1556 = vsyncpa %s1555, 1

</llo_original>
